<compile_context>
chip_gen: v7x
topology: tpu7x:2x2x1
jax: 0.10.0
libtpu: 0.0.40
codegen_flags: <defaults>
</compile_context>

<pallas_src>
import functools

import jax
import jax.numpy as jnp
from jax.experimental import pallas as pl
from jax.experimental.pallas import tpu as pltpu

PI = 3.1415927410125732  # value hard-coded in the PyTorch module
N_FREQS = 4              # forward() uses i = 0, 1, 2, 3


def _posmap_kernel(x_ref, o_ref, *, split, pos_scale, heading_scale):
    """x_ref: (TR, D) input tile; o_ref: (TR, 9*D) output tile."""
    x = x_ref[...].astype(jnp.float32)        # compute in f32 regardless of input dtype
    d = x.shape[-1]

    # Per-feature constants, shape (1, D); broadcast over the row axis.
    feat = jax.lax.broadcasted_iota(jnp.int32, (1, d), 1)
    is_pos = feat < split
    scale = jnp.where(is_pos, jnp.float32(pos_scale), jnp.float32(heading_scale))
    inv = jnp.where(is_pos, jnp.float32(1.0 / pos_scale),
                    jnp.float32(1.0 / heading_scale))

    xs = x * scale                            # x_scale in the PyTorch forward
    parts = [x]                               # h[0] = unscaled input
    for i in range(N_FREQS):
        arg = jnp.float32((2.0 ** i) * PI) * xs   # (2^i * PI) folds to one constant
        parts.append(jnp.sin(arg) * inv)
        parts.append(jnp.cos(arg) * inv)

    # Single full-tile store of the concatenated (TR, 9*D) slab.
    o_ref[...] = jnp.concatenate(parts, axis=-1).astype(o_ref.dtype)


def positional_mapping(x, *, pos_scale=0.01, heading_scale=1.0):
    """Pallas TPU implementation of PositionalMapping.forward.

    x: (B, S, D) float32
    returns: (B, S, 9 * D) float32
    """
    b, s, d = x.shape
    split = int(2 * d / 3)
    d_out = d * (N_FREQS * 2 + 1)

    n = b * s
    x2 = x.reshape(n, d)                      # contiguous reshape: no data movement

    # Row-tile sizing: multiple of 8, large enough to amortize the ~0.35us
    # per-grid-step overhead and reach HBM roofline, small enough that the
    # double-buffered in+out tiles (~2*(D + 9D)*4*TR bytes) stay well under
    # the scoped-VMEM limit on every TPU generation.
    itemsize = jnp.dtype(x.dtype).itemsize
    bytes_per_row = 2 * (d + d_out) * itemsize        # double-buffered in + out
    tr = (8 * 1024 * 1024) // max(bytes_per_row, 1)   # ~8 MiB tile budget
    tr = max(8, min(2048, (tr // 8) * 8))
    if n < tr:                                        # small inputs: one tile
        tr = max(8, ((n + 7) // 8) * 8)

    n_pad = pl.cdiv(n, tr) * tr
    if n_pad != n:
        x2 = jnp.pad(x2, ((0, n_pad - n), (0, 0)))

    kernel = functools.partial(
        _posmap_kernel,
        split=split,
        pos_scale=float(pos_scale),
        heading_scale=float(heading_scale),
    )

    out = pl.pallas_call(
        kernel,
        out_shape=jax.ShapeDtypeStruct((n_pad, d_out), x.dtype),
        grid_spec=pltpu.PrefetchScalarGridSpec(
            num_scalar_prefetch=0,
            grid=(n_pad // tr,),
            in_specs=[pl.BlockSpec((tr, d), lambda i: (i, 0))],
            out_specs=pl.BlockSpec((tr, d_out), lambda i: (i, 0)),
        ),
        compiler_params=pltpu.CompilerParams(
            dimension_semantics=("parallel",),
            vmem_limit_bytes=32 * 1024 * 1024,
        ),
    )(x2)

    if n_pad != n:
        out = out[:n]
    return out.reshape(b, s, d_out)


def positional_mapping_ref(x, *, pos_scale=0.01, heading_scale=1.0):
    """Pure-JAX reference mirroring the PyTorch forward exactly."""
    b, s, d = x.shape
    split = int(2 * d / 3)
    scale = jnp.concatenate(
        [jnp.full((split,), pos_scale, jnp.float32),
         jnp.full((d - split,), heading_scale, jnp.float32)])
    inv = jnp.concatenate(
        [jnp.full((split,), 1.0 / pos_scale, jnp.float32),
         jnp.full((d - split,), 1.0 / heading_scale, jnp.float32)])
    xf = x.astype(jnp.float32)
    xs = xf * scale
    h = [xf]
    for i in range(N_FREQS):
        arg = jnp.float32((2.0 ** i) * PI) * xs
        h.append(jnp.sin(arg) * inv)
        h.append(jnp.cos(arg) * inv)
    return jnp.concatenate(h, axis=-1).astype(x.dtype)


if __name__ == "__main__":
    key = jax.random.PRNGKey(0)
    B, S, D = 2, 8, 6          # input_dim = 6 -> split index = 4, output dim = 54
    x = jax.random.normal(key, (B, S, D), dtype=jnp.float32)

    out = positional_mapping(x)
    out = jax.block_until_ready(out)

    ref = positional_mapping_ref(x)
    assert out.shape == (B, S, D * (N_FREQS * 2 + 1)), out.shape
    assert jnp.allclose(out, ref, atol=1e-5, rtol=1e-5), "mismatch vs reference"

    print("KERNEL_OK")
</pallas_src>

<mosaic_0001>
module attributes {stable_mosaic.version = 11 : i64} {
  func.func @_posmap_kernel(%arg0: i32, %arg1: memref<16x6xf32, #tpu.memory_space<vmem>>, %arg2: memref<16x54xf32, #tpu.memory_space<vmem>>) attributes {dimension_semantics = [#tpu.dimension_semantics<parallel>], iteration_bounds = array<i64: 1>, scalar_prefetch = 0 : i64, scratch_operands = 0 : i64, tpu.core_type = #tpu.core_type<tc>, window_params = [{transform_indices = @transform_0, window_bounds = array<i64: 16, 6>}, {transform_indices = @transform_1, window_bounds = array<i64: 16, 54>}]} {
    %c0 = arith.constant 0 : index
    %c0_0 = arith.constant 0 : index
    %0 = vector.load %arg1[%c0, %c0_0] : memref<16x6xf32, #tpu.memory_space<vmem>>, vector<16x6xf32>
    %1 = tpu.iota {dimensions = array<i32: 1>} : vector<1x6xi32>
    %c4_i32 = arith.constant 4 : i32
    %2 = vector.broadcast %c4_i32 : i32 to vector<1x6xi32>
    %3 = arith.cmpi slt, %1, %2 : vector<1x6xi32>
    %cst = arith.constant 0.00999999977 : f32
    %cst_1 = arith.constant 1.000000e+00 : f32
    %4 = vector.broadcast %cst : f32 to vector<1x6xf32>
    %5 = vector.broadcast %cst_1 : f32 to vector<1x6xf32>
    %6 = arith.select %3, %4, %5 : vector<1x6xi1>, vector<1x6xf32>
    %cst_2 = arith.constant 1.000000e+02 : f32
    %cst_3 = arith.constant 1.000000e+00 : f32
    %7 = vector.broadcast %cst_2 : f32 to vector<1x6xf32>
    %8 = vector.broadcast %cst_3 : f32 to vector<1x6xf32>
    %9 = arith.select %3, %7, %8 : vector<1x6xi1>, vector<1x6xf32>
    %10 = vector.broadcast %6 : vector<1x6xf32> to vector<16x6xf32>
    %11 = arith.mulf %0, %10 : vector<16x6xf32>
    %cst_4 = arith.constant 3.14159274 : f32
    %12 = vector.broadcast %cst_4 : f32 to vector<16x6xf32>
    %13 = arith.mulf %12, %11 : vector<16x6xf32>
    %14 = math.sin %13 : vector<16x6xf32>
    %15 = vector.broadcast %9 : vector<1x6xf32> to vector<16x6xf32>
    %16 = arith.mulf %14, %15 : vector<16x6xf32>
    %17 = math.cos %13 : vector<16x6xf32>
    %18 = vector.broadcast %9 : vector<1x6xf32> to vector<16x6xf32>
    %19 = arith.mulf %17, %18 : vector<16x6xf32>
    %cst_5 = arith.constant 6.28318548 : f32
    %20 = vector.broadcast %cst_5 : f32 to vector<16x6xf32>
    %21 = arith.mulf %20, %11 : vector<16x6xf32>
    %22 = math.sin %21 : vector<16x6xf32>
    %23 = vector.broadcast %9 : vector<1x6xf32> to vector<16x6xf32>
    %24 = arith.mulf %22, %23 : vector<16x6xf32>
    %25 = math.cos %21 : vector<16x6xf32>
    %26 = vector.broadcast %9 : vector<1x6xf32> to vector<16x6xf32>
    %27 = arith.mulf %25, %26 : vector<16x6xf32>
    %cst_6 = arith.constant 12.566371 : f32
    %28 = vector.broadcast %cst_6 : f32 to vector<16x6xf32>
    %29 = arith.mulf %28, %11 : vector<16x6xf32>
    %30 = math.sin %29 : vector<16x6xf32>
    %31 = vector.broadcast %9 : vector<1x6xf32> to vector<16x6xf32>
    %32 = arith.mulf %30, %31 : vector<16x6xf32>
    %33 = math.cos %29 : vector<16x6xf32>
    %34 = vector.broadcast %9 : vector<1x6xf32> to vector<16x6xf32>
    %35 = arith.mulf %33, %34 : vector<16x6xf32>
    %cst_7 = arith.constant 25.1327419 : f32
    %36 = vector.broadcast %cst_7 : f32 to vector<16x6xf32>
    %37 = arith.mulf %36, %11 : vector<16x6xf32>
    %38 = math.sin %37 : vector<16x6xf32>
    %39 = vector.broadcast %9 : vector<1x6xf32> to vector<16x6xf32>
    %40 = arith.mulf %38, %39 : vector<16x6xf32>
    %41 = math.cos %37 : vector<16x6xf32>
    %42 = vector.broadcast %9 : vector<1x6xf32> to vector<16x6xf32>
    %43 = arith.mulf %41, %42 : vector<16x6xf32>
    %44 = tpu.concatenate %0, %16, %19, %24, %27, %32, %35, %40, %43 in 1 : vector<16x6xf32>, vector<16x6xf32>, vector<16x6xf32>, vector<16x6xf32>, vector<16x6xf32>, vector<16x6xf32>, vector<16x6xf32>, vector<16x6xf32>, vector<16x6xf32> -> vector<16x54xf32>
    %c0_8 = arith.constant 0 : index
    %c0_9 = arith.constant 0 : index
    %45 = vector.load %arg2[%c0_8, %c0_9] : memref<16x54xf32, #tpu.memory_space<vmem>>, vector<16x54xf32>
    tpu.vector_store %arg2[%c0_8, %c0_9], %44 {strides = array<i32>} : memref<16x54xf32, #tpu.memory_space<vmem>>, vector<16x54xf32>,
    return
  }
  func.func @transform_0(%arg0: i32) -> (i32, i32) {
    %c0_i32 = arith.constant 0 : i32
    %c0_i32_0 = arith.constant 0 : i32
    return %arg0, %c0_i32 : i32, i32
  }
  func.func @transform_1(%arg0: i32) -> (i32, i32) {
    %c0_i32 = arith.constant 0 : i32
    %c0_i32_0 = arith.constant 0 : i32
    return %arg0, %c0_i32 : i32, i32
  }
}

</mosaic_0001>

<llo_original>
// kernel: tpu_custom_call.1
$region0: #{tpu_custom_call.1}
  #allocation0 [shape = 'u32[]', space=smem, size = 0x4, offset = 0x4, fixed_abs, tag = 'smem constant byte address 0x4 - core index']
  #allocation1 [shape = 'u32[144,128]{1,0:T(1,128)}', space=vmem, size = 0x12000, scoped, tag = 'internal scratch']
  %s0 = inlined_call_operand.vmem [shape: f32[16,6], index: 0, kind: input, shape index: {}]
  %s1 = inlined_call_operand.hbm [shape: f32[16,54], index: 1, kind: output, shape index: {}]
  %s2 = sld [smem:[#allocation0]]
  $region14: #{tpu_custom_call.1} parent=0
    _
  %s4 = ssub.s32 1, %s2
  %s5 = scalar_select 0, %s4, %s2
  $region1: #{tpu_custom_call.1} parent=0
    #allocation2 [shape = 'u8[8192]{0}', space=vmem, size = 0x2000, scoped, tag = 'output window, operand 0, single buffered']
    #allocation3 [shape = 's32[1]{0}', space=sflag, size = 0x4, scoped, tag = 'scoped memory for tpu_custom_call.1']
    %6 = vsyncpa [#allocation3], 0
    // Predicated region
    $region2: #{tpu_custom_call.1} parent=1 // pred_check
      _
    $region3: #{tpu_custom_call.1} parent=1 // pred_check_branch
      %8 = sbr.rel (0) target = $region5
    $region4: #{tpu_custom_call.1} parent=1 // pred_region
      _
    $region5: #{tpu_custom_call.1} parent=1 // pred_fallthru
      _
    %v9 = vld [vmem:[%s0] sm:$0xff]
    %v10 = vld [vmem:[%s0 + $0x8] sm:$0xff]
    %v11 = vlaneseq
    %v12 = vand.u32 %v11, 127
    %vm13 = vcmp.lt.s32.totalorder %v12, 4
    %v14 = vsel %vm13, 0.01, 1.0
    %v15 = vsel %vm13, 100.0, 1.0
    %v16 = vmul.f32 %v9, %v14
    %v17 = vmul.f32 %v10, %v14
    %v18 = vmul.f32 %v16, 3.1415927
    %v19 = vmul.f32 %v17, 3.1415927
    %v20 = vand.u32 2147483647, %v18
    %vm21 = vcmp.le.f32.partialorder %v20, 0.7853982
    %vm22 = vcmp.lt.s32.totalorder %v18, 0
    %v23 = vand.u32 %v18, 2139095040
    %v24 = vshrl.u32 %v23, 23
    %v25 = vsub.s32 %v24, 127
    %v26 = vand.u32 2147483647, %v18
    %v27 = vand.u32 %v26, 8388607
    %v28 = vor.u32 %v27, 8388608
    %v29 = vsub.s32 0, %v28
    %v30 = vadd.s32 %v25, 1
    %vm31 = vcmp.gt.s32.totalorder %v30, 0
    %v32 = vsel %vm31, %v30, 0
    %v33 = vshrl.u32 %v32, 5
    %v34 = vand.u32 %v32, 31
    %v35 = vsub.s32 32, %v34
    %v36 = vshrl.u32 683565275, %v35
    %v37 = vshll.u32 683565275, %v34
    %v38 = vshrl.u32 2475754826, %v35
    %v39 = vor.u32 %v37, %v38
    %v40 = vshll.u32 2475754826, %v34
    %v41 = vshrl.u32 2131351028, %v35
    %v42 = vor.u32 %v40, %v41
    %v43 = vshll.u32 2131351028, %v34
    %v44 = vshrl.u32 2102212464, %v35
    %v45 = vor.u32 %v43, %v44
    %v46 = vshll.u32 2102212464, %v34
    %v47 = vshrl.u32 920167782, %v35
    %v48 = vor.u32 %v46, %v47
    %v49 = vshll.u32 920167782, %v34
    %v50 = vshrl.u32 1326507024, %v35
    %v51 = vor.u32 %v49, %v50
    %vm52 = vcmp.lt.s32.totalorder %v33, 1
    %vm53 = vcmp.lt.s32.totalorder %v33, 2
    %vm54 = vcmp.lt.s32.totalorder %v33, 3
    %vm55 = vcmp.lt.s32.totalorder %v33, 4
    %v56 = vsel %vm52, %v36, %v39
    %v57 = vsel %vm55, %v45, 2102212464
    %v58 = vsel %vm54, %v42, %v57
    %v59 = vsel %vm53, %v56, %v58
    %v60 = vsel %vm52, %v39, %v42
    %v61 = vsel %vm55, %v48, 920167782
    %v62 = vsel %vm54, %v45, %v61
    %v63 = vsel %vm53, %v60, %v62
    %v64 = vsel %vm52, %v42, %v45
    %v65 = vsel %vm55, %v51, 1326507024
    %v66 = vsel %vm54, %v48, %v65
    %v67 = vsel %vm53, %v64, %v66
    %v68 = vshll.u32 %v28, 8
    %v69 = vmul.u32.u64.compose %v68, %v67
    %v70 = vextract.low.u32 %v69
    %v71 = vextract.high.u32 %v69
    %v72 = vmul.u32.u64.compose %v68, %v63
    %v73 = vextract.low.u32 %v72
    %v74 = vextract.high.u32 %v72
    %v75 = vmul.u32 %v68, %v59
    %v76 = vadd.s32 %v71, %v73
    %vm77 = vc.u32 %v71, %v73
    %v78 = vadd.s32 %v74, 1
    %v79 = vsel %vm77, %v78, %v74
    %v80 = vadd.s32 %v75, %v79
    %v81 = vadd.s32 %v80, 536870912
    %v82 = vshrl.u32 %v81, 30
    %v83 = vshll.u32 %v82, 30
    %v84 = vsub.s32 %v80, %v83
    %vm85 = vcmp.lt.s32.totalorder %v84, 0
    %v86 = vsub.s32 0, %v84
    %v87 = vsel %vm85, %v86, %v84
    %v88 = vclz %v87
    %v89 = vsub.s32 %v88, 2
    %vm90 = vcmp.gt.s32.totalorder 0, %v89
    %v91 = vsel %vm90, 0, %v89
    %v92 = vsub.s32 32, %v91
    %v93 = vshll.u32 %v84, %v91
    %v94 = vshrl.u32 %v76, %v92
    %v95 = vor.u32 %v93, %v94
    %v96 = vsub.s32 4294967266, %v91
    %v97 = vadd.s32 %v96, 127
    %v98 = vshll.u32 %v97, 23
    %v99 = vor.u32 4788187, %v98
    %v100 = vand.u32 2147483647, %v99
    %v102 = vcvt.s32.f32 %v95
    %v103 = vmul.f32 %v102, %v100
    %v104 = vxor.u32 %v103, 2147483648
    %v105 = vsel %vm22, %v104, %v103
    %v106 = vsub.s32 4, %v82
    %v107 = vsel %vm22, %v106, %v82
    %v108 = vsel %vm21, %v18, %v105
    %v109 = vsel %vm21, 0, %v107
    %v110 = vcosq.f32.pop %v108
    %v111 = vsinq.f32.pop %v108
    %vm112 = vweird.f32 %v18
    %v113 = vadd.s32 %v109, 3
    %v114 = vand.u32 %v113, 3
    %vm115 = vcmp.lt.s32.totalorder %v114, 2
    %vm116 = vcmp.eq.s32.totalorder %v114, 0
    %v117 = vxor.u32 %v111, 2147483648
    %v118 = vsel %vm116, %v110, %v117
    %vm119 = vcmp.eq.s32.totalorder %v114, 2
    %v120 = vxor.u32 %v110, 2147483648
    %v121 = vsel %vm119, %v120, %v111
    %v122 = vsel %vm115, %v118, %v121
    %v123 = vsel %vm112, nan, %v122
    %v124 = vand.u32 2147483647, %v19
    %vm125 = vcmp.le.f32.partialorder %v124, 0.7853982
    %vm126 = vcmp.lt.s32.totalorder %v19, 0
    %v127 = vand.u32 %v19, 2139095040
    %v128 = vshrl.u32 %v127, 23
    %v129 = vsub.s32 %v128, 127
    %v130 = vand.u32 2147483647, %v19
    %v131 = vand.u32 %v130, 8388607
    %v132 = vor.u32 %v131, 8388608
    %v133 = vsub.s32 0, %v132
    %v134 = vadd.s32 %v129, 1
    %vm135 = vcmp.gt.s32.totalorder %v134, 0
    %v136 = vsel %vm135, %v134, 0
    %v137 = vshrl.u32 %v136, 5
    %v138 = vand.u32 %v136, 31
    %v139 = vsub.s32 32, %v138
    %v140 = vshrl.u32 683565275, %v139
    %v141 = vshll.u32 683565275, %v138
    %v142 = vshrl.u32 2475754826, %v139
    %v143 = vor.u32 %v141, %v142
    %v144 = vshll.u32 2475754826, %v138
    %v145 = vshrl.u32 2131351028, %v139
    %v146 = vor.u32 %v144, %v145
    %v147 = vshll.u32 2131351028, %v138
    %v148 = vshrl.u32 2102212464, %v139
    %v149 = vor.u32 %v147, %v148
    %v150 = vshll.u32 2102212464, %v138
    %v151 = vshrl.u32 920167782, %v139
    %v152 = vor.u32 %v150, %v151
    %v153 = vshll.u32 920167782, %v138
    %v154 = vshrl.u32 1326507024, %v139
    %v155 = vor.u32 %v153, %v154
    %vm156 = vcmp.lt.s32.totalorder %v137, 1
    %vm157 = vcmp.lt.s32.totalorder %v137, 2
    %vm158 = vcmp.lt.s32.totalorder %v137, 3
    %vm159 = vcmp.lt.s32.totalorder %v137, 4
    %v160 = vsel %vm156, %v140, %v143
    %v161 = vsel %vm159, %v149, 2102212464
    %v162 = vsel %vm158, %v146, %v161
    %v163 = vsel %vm157, %v160, %v162
    %v164 = vsel %vm156, %v143, %v146
    %v165 = vsel %vm159, %v152, 920167782
    %v166 = vsel %vm158, %v149, %v165
    %v167 = vsel %vm157, %v164, %v166
    %v168 = vsel %vm156, %v146, %v149
    %v169 = vsel %vm159, %v155, 1326507024
    %v170 = vsel %vm158, %v152, %v169
    %v171 = vsel %vm157, %v168, %v170
    %v172 = vshll.u32 %v132, 8
    %v173 = vmul.u32.u64.compose %v172, %v171
    %v174 = vextract.low.u32 %v173
    %v175 = vextract.high.u32 %v173
    %v176 = vmul.u32.u64.compose %v172, %v167
    %v177 = vextract.low.u32 %v176
    %v178 = vextract.high.u32 %v176
    %v179 = vmul.u32 %v172, %v163
    %v180 = vadd.s32 %v175, %v177
    %vm181 = vc.u32 %v175, %v177
    %v182 = vadd.s32 %v178, 1
    %v183 = vsel %vm181, %v182, %v178
    %v184 = vadd.s32 %v179, %v183
    %v185 = vadd.s32 %v184, 536870912
    %v186 = vshrl.u32 %v185, 30
    %v187 = vshll.u32 %v186, 30
    %v188 = vsub.s32 %v184, %v187
    %vm189 = vcmp.lt.s32.totalorder %v188, 0
    %v190 = vsub.s32 0, %v188
    %v191 = vsel %vm189, %v190, %v188
    %v192 = vclz %v191
    %v193 = vsub.s32 %v192, 2
    %vm194 = vcmp.gt.s32.totalorder 0, %v193
    %v195 = vsel %vm194, 0, %v193
    %v196 = vsub.s32 32, %v195
    %v197 = vshll.u32 %v188, %v195
    %v198 = vshrl.u32 %v180, %v196
    %v199 = vor.u32 %v197, %v198
    %v200 = vsub.s32 4294967266, %v195
    %v201 = vadd.s32 %v200, 127
    %v202 = vshll.u32 %v201, 23
    %v203 = vor.u32 4788187, %v202
    %v204 = vand.u32 2147483647, %v203
    %v206 = vcvt.s32.f32 %v199
    %v207 = vmul.f32 %v206, %v204
    %v208 = vxor.u32 %v207, 2147483648
    %v209 = vsel %vm126, %v208, %v207
    %v210 = vsub.s32 4, %v186
    %v211 = vsel %vm126, %v210, %v186
    %v212 = vsel %vm125, %v19, %v209
    %v213 = vsel %vm125, 0, %v211
    %v214 = vcosq.f32.pop %v212
    %v215 = vsinq.f32.pop %v212
    %vm216 = vweird.f32 %v19
    %v217 = vadd.s32 %v213, 3
    %v218 = vand.u32 %v217, 3
    %vm219 = vcmp.lt.s32.totalorder %v218, 2
    %vm220 = vcmp.eq.s32.totalorder %v218, 0
    %v221 = vxor.u32 %v215, 2147483648
    %v222 = vsel %vm220, %v214, %v221
    %vm223 = vcmp.eq.s32.totalorder %v218, 2
    %v224 = vxor.u32 %v214, 2147483648
    %v225 = vsel %vm223, %v224, %v215
    %v226 = vsel %vm219, %v222, %v225
    %v227 = vsel %vm216, nan, %v226
    %v228 = vmul.f32 %v123, %v15
    %v229 = vmul.f32 %v227, %v15
    %v230 = vand.u32 2147483647, %v18
    %vm231 = vcmp.le.f32.partialorder %v230, 0.7853982
    %vm232 = vcmp.lt.s32.totalorder %v18, 0
    %v233 = vand.u32 %v18, 2139095040
    %v234 = vshrl.u32 %v233, 23
    %v235 = vsub.s32 %v234, 127
    %v236 = vand.u32 2147483647, %v18
    %v237 = vand.u32 %v236, 8388607
    %v238 = vor.u32 %v237, 8388608
    %v239 = vsub.s32 0, %v238
    %v240 = vadd.s32 %v235, 1
    %vm241 = vcmp.gt.s32.totalorder %v240, 0
    %v242 = vsel %vm241, %v240, 0
    %v243 = vshrl.u32 %v242, 5
    %v244 = vand.u32 %v242, 31
    %v245 = vsub.s32 32, %v244
    %v246 = vshrl.u32 683565275, %v245
    %v247 = vshll.u32 683565275, %v244
    %v248 = vshrl.u32 2475754826, %v245
    %v249 = vor.u32 %v247, %v248
    %v250 = vshll.u32 2475754826, %v244
    %v251 = vshrl.u32 2131351028, %v245
    %v252 = vor.u32 %v250, %v251
    %v253 = vshll.u32 2131351028, %v244
    %v254 = vshrl.u32 2102212464, %v245
    %v255 = vor.u32 %v253, %v254
    %v256 = vshll.u32 2102212464, %v244
    %v257 = vshrl.u32 920167782, %v245
    %v258 = vor.u32 %v256, %v257
    %v259 = vshll.u32 920167782, %v244
    %v260 = vshrl.u32 1326507024, %v245
    %v261 = vor.u32 %v259, %v260
    %vm262 = vcmp.lt.s32.totalorder %v243, 1
    %vm263 = vcmp.lt.s32.totalorder %v243, 2
    %vm264 = vcmp.lt.s32.totalorder %v243, 3
    %vm265 = vcmp.lt.s32.totalorder %v243, 4
    %v266 = vsel %vm262, %v246, %v249
    %v267 = vsel %vm265, %v255, 2102212464
    %v268 = vsel %vm264, %v252, %v267
    %v269 = vsel %vm263, %v266, %v268
    %v270 = vsel %vm262, %v249, %v252
    %v271 = vsel %vm265, %v258, 920167782
    %v272 = vsel %vm264, %v255, %v271
    %v273 = vsel %vm263, %v270, %v272
    %v274 = vsel %vm262, %v252, %v255
    %v275 = vsel %vm265, %v261, 1326507024
    %v276 = vsel %vm264, %v258, %v275
    %v277 = vsel %vm263, %v274, %v276
    %v278 = vshll.u32 %v238, 8
    %v279 = vmul.u32.u64.compose %v278, %v277
    %v280 = vextract.low.u32 %v279
    %v281 = vextract.high.u32 %v279
    %v282 = vmul.u32.u64.compose %v278, %v273
    %v283 = vextract.low.u32 %v282
    %v284 = vextract.high.u32 %v282
    %v285 = vmul.u32 %v278, %v269
    %v286 = vadd.s32 %v281, %v283
    %vm287 = vc.u32 %v281, %v283
    %v288 = vadd.s32 %v284, 1
    %v289 = vsel %vm287, %v288, %v284
    %v290 = vadd.s32 %v285, %v289
    %v291 = vadd.s32 %v290, 536870912
    %v292 = vshrl.u32 %v291, 30
    %v293 = vshll.u32 %v292, 30
    %v294 = vsub.s32 %v290, %v293
    %vm295 = vcmp.lt.s32.totalorder %v294, 0
    %v296 = vsub.s32 0, %v294
    %v297 = vsel %vm295, %v296, %v294
    %v298 = vclz %v297
    %v299 = vsub.s32 %v298, 2
    %vm300 = vcmp.gt.s32.totalorder 0, %v299
    %v301 = vsel %vm300, 0, %v299
    %v302 = vsub.s32 32, %v301
    %v303 = vshll.u32 %v294, %v301
    %v304 = vshrl.u32 %v286, %v302
    %v305 = vor.u32 %v303, %v304
    %v306 = vsub.s32 4294967266, %v301
    %v307 = vadd.s32 %v306, 127
    %v308 = vshll.u32 %v307, 23
    %v309 = vor.u32 4788187, %v308
    %v310 = vand.u32 2147483647, %v309
    %v312 = vcvt.s32.f32 %v305
    %v313 = vmul.f32 %v312, %v310
    %v314 = vxor.u32 %v313, 2147483648
    %v315 = vsel %vm232, %v314, %v313
    %v316 = vsub.s32 4, %v292
    %v317 = vsel %vm232, %v316, %v292
    %v318 = vsel %vm231, %v18, %v315
    %v319 = vsel %vm231, 0, %v317
    %v320 = vcosq.f32.pop %v318
    %v321 = vsinq.f32.pop %v318
    %vm322 = vweird.f32 %v18
    %v323 = vand.u32 %v319, 3
    %vm324 = vcmp.lt.s32.totalorder %v323, 2
    %vm325 = vcmp.eq.s32.totalorder %v323, 0
    %v326 = vxor.u32 %v321, 2147483648
    %v327 = vsel %vm325, %v320, %v326
    %vm328 = vcmp.eq.s32.totalorder %v323, 2
    %v329 = vxor.u32 %v320, 2147483648
    %v330 = vsel %vm328, %v329, %v321
    %v331 = vsel %vm324, %v327, %v330
    %v332 = vsel %vm322, nan, %v331
    %v333 = vand.u32 2147483647, %v19
    %vm334 = vcmp.le.f32.partialorder %v333, 0.7853982
    %vm335 = vcmp.lt.s32.totalorder %v19, 0
    %v336 = vand.u32 %v19, 2139095040
    %v337 = vshrl.u32 %v336, 23
    %v338 = vsub.s32 %v337, 127
    %v339 = vand.u32 2147483647, %v19
    %v340 = vand.u32 %v339, 8388607
    %v341 = vor.u32 %v340, 8388608
    %v342 = vsub.s32 0, %v341
    %v343 = vadd.s32 %v338, 1
    %vm344 = vcmp.gt.s32.totalorder %v343, 0
    %v345 = vsel %vm344, %v343, 0
    %v346 = vshrl.u32 %v345, 5
    %v347 = vand.u32 %v345, 31
    %v348 = vsub.s32 32, %v347
    %v349 = vshrl.u32 683565275, %v348
    %v350 = vshll.u32 683565275, %v347
    %v351 = vshrl.u32 2475754826, %v348
    %v352 = vor.u32 %v350, %v351
    %v353 = vshll.u32 2475754826, %v347
    %v354 = vshrl.u32 2131351028, %v348
    %v355 = vor.u32 %v353, %v354
    %v356 = vshll.u32 2131351028, %v347
    %v357 = vshrl.u32 2102212464, %v348
    %v358 = vor.u32 %v356, %v357
    %v359 = vshll.u32 2102212464, %v347
    %v360 = vshrl.u32 920167782, %v348
    %v361 = vor.u32 %v359, %v360
    %v362 = vshll.u32 920167782, %v347
    %v363 = vshrl.u32 1326507024, %v348
    %v364 = vor.u32 %v362, %v363
    %vm365 = vcmp.lt.s32.totalorder %v346, 1
    %vm366 = vcmp.lt.s32.totalorder %v346, 2
    %vm367 = vcmp.lt.s32.totalorder %v346, 3
    %vm368 = vcmp.lt.s32.totalorder %v346, 4
    %v369 = vsel %vm365, %v349, %v352
    %v370 = vsel %vm368, %v358, 2102212464
    %v371 = vsel %vm367, %v355, %v370
    %v372 = vsel %vm366, %v369, %v371
    %v373 = vsel %vm365, %v352, %v355
    %v374 = vsel %vm368, %v361, 920167782
    %v375 = vsel %vm367, %v358, %v374
    %v376 = vsel %vm366, %v373, %v375
    %v377 = vsel %vm365, %v355, %v358
    %v378 = vsel %vm368, %v364, 1326507024
    %v379 = vsel %vm367, %v361, %v378
    %v380 = vsel %vm366, %v377, %v379
    %v381 = vshll.u32 %v341, 8
    %v382 = vmul.u32.u64.compose %v381, %v380
    %v383 = vextract.low.u32 %v382
    %v384 = vextract.high.u32 %v382
    %v385 = vmul.u32.u64.compose %v381, %v376
    %v386 = vextract.low.u32 %v385
    %v387 = vextract.high.u32 %v385
    %v388 = vmul.u32 %v381, %v372
    %v389 = vadd.s32 %v384, %v386
    %vm390 = vc.u32 %v384, %v386
    %v391 = vadd.s32 %v387, 1
    %v392 = vsel %vm390, %v391, %v387
    %v393 = vadd.s32 %v388, %v392
    %v394 = vadd.s32 %v393, 536870912
    %v395 = vshrl.u32 %v394, 30
    %v396 = vshll.u32 %v395, 30
    %v397 = vsub.s32 %v393, %v396
    %vm398 = vcmp.lt.s32.totalorder %v397, 0
    %v399 = vsub.s32 0, %v397
    %v400 = vsel %vm398, %v399, %v397
    %v401 = vclz %v400
    %v402 = vsub.s32 %v401, 2
    %vm403 = vcmp.gt.s32.totalorder 0, %v402
    %v404 = vsel %vm403, 0, %v402
    %v405 = vsub.s32 32, %v404
    %v406 = vshll.u32 %v397, %v404
    %v407 = vshrl.u32 %v389, %v405
    %v408 = vor.u32 %v406, %v407
    %v409 = vsub.s32 4294967266, %v404
    %v410 = vadd.s32 %v409, 127
    %v411 = vshll.u32 %v410, 23
    %v412 = vor.u32 4788187, %v411
    %v413 = vand.u32 2147483647, %v412
    %v415 = vcvt.s32.f32 %v408
    %v416 = vmul.f32 %v415, %v413
    %v417 = vxor.u32 %v416, 2147483648
    %v418 = vsel %vm335, %v417, %v416
    %v419 = vsub.s32 4, %v395
    %v420 = vsel %vm335, %v419, %v395
    %v421 = vsel %vm334, %v19, %v418
    %v422 = vsel %vm334, 0, %v420
    %v423 = vcosq.f32.pop %v421
    %v424 = vsinq.f32.pop %v421
    %vm425 = vweird.f32 %v19
    %v426 = vand.u32 %v422, 3
    %vm427 = vcmp.lt.s32.totalorder %v426, 2
    %vm428 = vcmp.eq.s32.totalorder %v426, 0
    %v429 = vxor.u32 %v424, 2147483648
    %v430 = vsel %vm428, %v423, %v429
    %vm431 = vcmp.eq.s32.totalorder %v426, 2
    %v432 = vxor.u32 %v423, 2147483648
    %v433 = vsel %vm431, %v432, %v424
    %v434 = vsel %vm427, %v430, %v433
    %v435 = vsel %vm425, nan, %v434
    %v436 = vmul.f32 %v332, %v15
    %v437 = vmul.f32 %v435, %v15
    %v438 = vmul.f32 %v16, 6.2831855
    %v439 = vmul.f32 %v17, 6.2831855
    %v440 = vand.u32 2147483647, %v438
    %vm441 = vcmp.le.f32.partialorder %v440, 0.7853982
    %vm442 = vcmp.lt.s32.totalorder %v438, 0
    %v443 = vand.u32 %v438, 2139095040
    %v444 = vshrl.u32 %v443, 23
    %v445 = vsub.s32 %v444, 127
    %v446 = vand.u32 2147483647, %v438
    %v447 = vand.u32 %v446, 8388607
    %v448 = vor.u32 %v447, 8388608
    %v449 = vsub.s32 0, %v448
    %v450 = vadd.s32 %v445, 1
    %vm451 = vcmp.gt.s32.totalorder %v450, 0
    %v452 = vsel %vm451, %v450, 0
    %v453 = vshrl.u32 %v452, 5
    %v454 = vand.u32 %v452, 31
    %v455 = vsub.s32 32, %v454
    %v456 = vshrl.u32 683565275, %v455
    %v457 = vshll.u32 683565275, %v454
    %v458 = vshrl.u32 2475754826, %v455
    %v459 = vor.u32 %v457, %v458
    %v460 = vshll.u32 2475754826, %v454
    %v461 = vshrl.u32 2131351028, %v455
    %v462 = vor.u32 %v460, %v461
    %v463 = vshll.u32 2131351028, %v454
    %v464 = vshrl.u32 2102212464, %v455
    %v465 = vor.u32 %v463, %v464
    %v466 = vshll.u32 2102212464, %v454
    %v467 = vshrl.u32 920167782, %v455
    %v468 = vor.u32 %v466, %v467
    %v469 = vshll.u32 920167782, %v454
    %v470 = vshrl.u32 1326507024, %v455
    %v471 = vor.u32 %v469, %v470
    %vm472 = vcmp.lt.s32.totalorder %v453, 1
    %vm473 = vcmp.lt.s32.totalorder %v453, 2
    %vm474 = vcmp.lt.s32.totalorder %v453, 3
    %vm475 = vcmp.lt.s32.totalorder %v453, 4
    %v476 = vsel %vm472, %v456, %v459
    %v477 = vsel %vm475, %v465, 2102212464
    %v478 = vsel %vm474, %v462, %v477
    %v479 = vsel %vm473, %v476, %v478
    %v480 = vsel %vm472, %v459, %v462
    %v481 = vsel %vm475, %v468, 920167782
    %v482 = vsel %vm474, %v465, %v481
    %v483 = vsel %vm473, %v480, %v482
    %v484 = vsel %vm472, %v462, %v465
    %v485 = vsel %vm475, %v471, 1326507024
    %v486 = vsel %vm474, %v468, %v485
    %v487 = vsel %vm473, %v484, %v486
    %v488 = vshll.u32 %v448, 8
    %v489 = vmul.u32.u64.compose %v488, %v487
    %v490 = vextract.low.u32 %v489
    %v491 = vextract.high.u32 %v489
    %v492 = vmul.u32.u64.compose %v488, %v483
    %v493 = vextract.low.u32 %v492
    %v494 = vextract.high.u32 %v492
    %v495 = vmul.u32 %v488, %v479
    %v496 = vadd.s32 %v491, %v493
    %vm497 = vc.u32 %v491, %v493
    %v498 = vadd.s32 %v494, 1
    %v499 = vsel %vm497, %v498, %v494
    %v500 = vadd.s32 %v495, %v499
    %v501 = vadd.s32 %v500, 536870912
    %v502 = vshrl.u32 %v501, 30
    %v503 = vshll.u32 %v502, 30
    %v504 = vsub.s32 %v500, %v503
    %vm505 = vcmp.lt.s32.totalorder %v504, 0
    %v506 = vsub.s32 0, %v504
    %v507 = vsel %vm505, %v506, %v504
    %v508 = vclz %v507
    %v509 = vsub.s32 %v508, 2
    %vm510 = vcmp.gt.s32.totalorder 0, %v509
    %v511 = vsel %vm510, 0, %v509
    %v512 = vsub.s32 32, %v511
    %v513 = vshll.u32 %v504, %v511
    %v514 = vshrl.u32 %v496, %v512
    %v515 = vor.u32 %v513, %v514
    %v516 = vsub.s32 4294967266, %v511
    %v517 = vadd.s32 %v516, 127
    %v518 = vshll.u32 %v517, 23
    %v519 = vor.u32 4788187, %v518
    %v520 = vand.u32 2147483647, %v519
    %v522 = vcvt.s32.f32 %v515
    %v523 = vmul.f32 %v522, %v520
    %v524 = vxor.u32 %v523, 2147483648
    %v525 = vsel %vm442, %v524, %v523
    %v526 = vsub.s32 4, %v502
    %v527 = vsel %vm442, %v526, %v502
    %v528 = vsel %vm441, %v438, %v525
    %v529 = vsel %vm441, 0, %v527
    %v530 = vcosq.f32.pop %v528
    %v531 = vsinq.f32.pop %v528
    %vm532 = vweird.f32 %v438
    %v533 = vadd.s32 %v529, 3
    %v534 = vand.u32 %v533, 3
    %vm535 = vcmp.lt.s32.totalorder %v534, 2
    %vm536 = vcmp.eq.s32.totalorder %v534, 0
    %v537 = vxor.u32 %v531, 2147483648
    %v538 = vsel %vm536, %v530, %v537
    %vm539 = vcmp.eq.s32.totalorder %v534, 2
    %v540 = vxor.u32 %v530, 2147483648
    %v541 = vsel %vm539, %v540, %v531
    %v542 = vsel %vm535, %v538, %v541
    %v543 = vsel %vm532, nan, %v542
    %v544 = vand.u32 2147483647, %v439
    %vm545 = vcmp.le.f32.partialorder %v544, 0.7853982
    %vm546 = vcmp.lt.s32.totalorder %v439, 0
    %v547 = vand.u32 %v439, 2139095040
    %v548 = vshrl.u32 %v547, 23
    %v549 = vsub.s32 %v548, 127
    %v550 = vand.u32 2147483647, %v439
    %v551 = vand.u32 %v550, 8388607
    %v552 = vor.u32 %v551, 8388608
    %v553 = vsub.s32 0, %v552
    %v554 = vadd.s32 %v549, 1
    %vm555 = vcmp.gt.s32.totalorder %v554, 0
    %v556 = vsel %vm555, %v554, 0
    %v557 = vshrl.u32 %v556, 5
    %v558 = vand.u32 %v556, 31
    %v559 = vsub.s32 32, %v558
    %v560 = vshrl.u32 683565275, %v559
    %v561 = vshll.u32 683565275, %v558
    %v562 = vshrl.u32 2475754826, %v559
    %v563 = vor.u32 %v561, %v562
    %v564 = vshll.u32 2475754826, %v558
    %v565 = vshrl.u32 2131351028, %v559
    %v566 = vor.u32 %v564, %v565
    %v567 = vshll.u32 2131351028, %v558
    %v568 = vshrl.u32 2102212464, %v559
    %v569 = vor.u32 %v567, %v568
    %v570 = vshll.u32 2102212464, %v558
    %v571 = vshrl.u32 920167782, %v559
    %v572 = vor.u32 %v570, %v571
    %v573 = vshll.u32 920167782, %v558
    %v574 = vshrl.u32 1326507024, %v559
    %v575 = vor.u32 %v573, %v574
    %vm576 = vcmp.lt.s32.totalorder %v557, 1
    %vm577 = vcmp.lt.s32.totalorder %v557, 2
    %vm578 = vcmp.lt.s32.totalorder %v557, 3
    %vm579 = vcmp.lt.s32.totalorder %v557, 4
    %v580 = vsel %vm576, %v560, %v563
    %v581 = vsel %vm579, %v569, 2102212464
    %v582 = vsel %vm578, %v566, %v581
    %v583 = vsel %vm577, %v580, %v582
    %v584 = vsel %vm576, %v563, %v566
    %v585 = vsel %vm579, %v572, 920167782
    %v586 = vsel %vm578, %v569, %v585
    %v587 = vsel %vm577, %v584, %v586
    %v588 = vsel %vm576, %v566, %v569
    %v589 = vsel %vm579, %v575, 1326507024
    %v590 = vsel %vm578, %v572, %v589
    %v591 = vsel %vm577, %v588, %v590
    %v592 = vshll.u32 %v552, 8
    %v593 = vmul.u32.u64.compose %v592, %v591
    %v594 = vextract.low.u32 %v593
    %v595 = vextract.high.u32 %v593
    %v596 = vmul.u32.u64.compose %v592, %v587
    %v597 = vextract.low.u32 %v596
    %v598 = vextract.high.u32 %v596
    %v599 = vmul.u32 %v592, %v583
    %v600 = vadd.s32 %v595, %v597
    %vm601 = vc.u32 %v595, %v597
    %v602 = vadd.s32 %v598, 1
    %v603 = vsel %vm601, %v602, %v598
    %v604 = vadd.s32 %v599, %v603
    %v605 = vadd.s32 %v604, 536870912
    %v606 = vshrl.u32 %v605, 30
    %v607 = vshll.u32 %v606, 30
    %v608 = vsub.s32 %v604, %v607
    %vm609 = vcmp.lt.s32.totalorder %v608, 0
    %v610 = vsub.s32 0, %v608
    %v611 = vsel %vm609, %v610, %v608
    %v612 = vclz %v611
    %v613 = vsub.s32 %v612, 2
    %vm614 = vcmp.gt.s32.totalorder 0, %v613
    %v615 = vsel %vm614, 0, %v613
    %v616 = vsub.s32 32, %v615
    %v617 = vshll.u32 %v608, %v615
    %v618 = vshrl.u32 %v600, %v616
    %v619 = vor.u32 %v617, %v618
    %v620 = vsub.s32 4294967266, %v615
    %v621 = vadd.s32 %v620, 127
    %v622 = vshll.u32 %v621, 23
    %v623 = vor.u32 4788187, %v622
    %v624 = vand.u32 2147483647, %v623
    %v626 = vcvt.s32.f32 %v619
    %v627 = vmul.f32 %v626, %v624
    %v628 = vxor.u32 %v627, 2147483648
    %v629 = vsel %vm546, %v628, %v627
    %v630 = vsub.s32 4, %v606
    %v631 = vsel %vm546, %v630, %v606
    %v632 = vsel %vm545, %v439, %v629
    %v633 = vsel %vm545, 0, %v631
    %v634 = vcosq.f32.pop %v632
    %v635 = vsinq.f32.pop %v632
    %vm636 = vweird.f32 %v439
    %v637 = vadd.s32 %v633, 3
    %v638 = vand.u32 %v637, 3
    %vm639 = vcmp.lt.s32.totalorder %v638, 2
    %vm640 = vcmp.eq.s32.totalorder %v638, 0
    %v641 = vxor.u32 %v635, 2147483648
    %v642 = vsel %vm640, %v634, %v641
    %vm643 = vcmp.eq.s32.totalorder %v638, 2
    %v644 = vxor.u32 %v634, 2147483648
    %v645 = vsel %vm643, %v644, %v635
    %v646 = vsel %vm639, %v642, %v645
    %v647 = vsel %vm636, nan, %v646
    %v648 = vmul.f32 %v543, %v15
    %v649 = vmul.f32 %v647, %v15
    %v650 = vand.u32 2147483647, %v438
    %vm651 = vcmp.le.f32.partialorder %v650, 0.7853982
    %vm652 = vcmp.lt.s32.totalorder %v438, 0
    %v653 = vand.u32 %v438, 2139095040
    %v654 = vshrl.u32 %v653, 23
    %v655 = vsub.s32 %v654, 127
    %v656 = vand.u32 2147483647, %v438
    %v657 = vand.u32 %v656, 8388607
    %v658 = vor.u32 %v657, 8388608
    %v659 = vsub.s32 0, %v658
    %v660 = vadd.s32 %v655, 1
    %vm661 = vcmp.gt.s32.totalorder %v660, 0
    %v662 = vsel %vm661, %v660, 0
    %v663 = vshrl.u32 %v662, 5
    %v664 = vand.u32 %v662, 31
    %v665 = vsub.s32 32, %v664
    %v666 = vshrl.u32 683565275, %v665
    %v667 = vshll.u32 683565275, %v664
    %v668 = vshrl.u32 2475754826, %v665
    %v669 = vor.u32 %v667, %v668
    %v670 = vshll.u32 2475754826, %v664
    %v671 = vshrl.u32 2131351028, %v665
    %v672 = vor.u32 %v670, %v671
    %v673 = vshll.u32 2131351028, %v664
    %v674 = vshrl.u32 2102212464, %v665
    %v675 = vor.u32 %v673, %v674
    %v676 = vshll.u32 2102212464, %v664
    %v677 = vshrl.u32 920167782, %v665
    %v678 = vor.u32 %v676, %v677
    %v679 = vshll.u32 920167782, %v664
    %v680 = vshrl.u32 1326507024, %v665
    %v681 = vor.u32 %v679, %v680
    %vm682 = vcmp.lt.s32.totalorder %v663, 1
    %vm683 = vcmp.lt.s32.totalorder %v663, 2
    %vm684 = vcmp.lt.s32.totalorder %v663, 3
    %vm685 = vcmp.lt.s32.totalorder %v663, 4
    %v686 = vsel %vm682, %v666, %v669
    %v687 = vsel %vm685, %v675, 2102212464
    %v688 = vsel %vm684, %v672, %v687
    %v689 = vsel %vm683, %v686, %v688
    %v690 = vsel %vm682, %v669, %v672
    %v691 = vsel %vm685, %v678, 920167782
    %v692 = vsel %vm684, %v675, %v691
    %v693 = vsel %vm683, %v690, %v692
    %v694 = vsel %vm682, %v672, %v675
    %v695 = vsel %vm685, %v681, 1326507024
    %v696 = vsel %vm684, %v678, %v695
    %v697 = vsel %vm683, %v694, %v696
    %v698 = vshll.u32 %v658, 8
    %v699 = vmul.u32.u64.compose %v698, %v697
    %v700 = vextract.low.u32 %v699
    %v701 = vextract.high.u32 %v699
    %v702 = vmul.u32.u64.compose %v698, %v693
    %v703 = vextract.low.u32 %v702
    %v704 = vextract.high.u32 %v702
    %v705 = vmul.u32 %v698, %v689
    %v706 = vadd.s32 %v701, %v703
    %vm707 = vc.u32 %v701, %v703
    %v708 = vadd.s32 %v704, 1
    %v709 = vsel %vm707, %v708, %v704
    %v710 = vadd.s32 %v705, %v709
    %v711 = vadd.s32 %v710, 536870912
    %v712 = vshrl.u32 %v711, 30
    %v713 = vshll.u32 %v712, 30
    %v714 = vsub.s32 %v710, %v713
    %vm715 = vcmp.lt.s32.totalorder %v714, 0
    %v716 = vsub.s32 0, %v714
    %v717 = vsel %vm715, %v716, %v714
    %v718 = vclz %v717
    %v719 = vsub.s32 %v718, 2
    %vm720 = vcmp.gt.s32.totalorder 0, %v719
    %v721 = vsel %vm720, 0, %v719
    %v722 = vsub.s32 32, %v721
    %v723 = vshll.u32 %v714, %v721
    %v724 = vshrl.u32 %v706, %v722
    %v725 = vor.u32 %v723, %v724
    %v726 = vsub.s32 4294967266, %v721
    %v727 = vadd.s32 %v726, 127
    %v728 = vshll.u32 %v727, 23
    %v729 = vor.u32 4788187, %v728
    %v730 = vand.u32 2147483647, %v729
    %v732 = vcvt.s32.f32 %v725
    %v733 = vmul.f32 %v732, %v730
    %v734 = vxor.u32 %v733, 2147483648
    %v735 = vsel %vm652, %v734, %v733
    %v736 = vsub.s32 4, %v712
    %v737 = vsel %vm652, %v736, %v712
    %v738 = vsel %vm651, %v438, %v735
    %v739 = vsel %vm651, 0, %v737
    %v740 = vcosq.f32.pop %v738
    %v741 = vsinq.f32.pop %v738
    %vm742 = vweird.f32 %v438
    %v743 = vand.u32 %v739, 3
    %vm744 = vcmp.lt.s32.totalorder %v743, 2
    %vm745 = vcmp.eq.s32.totalorder %v743, 0
    %v746 = vxor.u32 %v741, 2147483648
    %v747 = vsel %vm745, %v740, %v746
    %vm748 = vcmp.eq.s32.totalorder %v743, 2
    %v749 = vxor.u32 %v740, 2147483648
    %v750 = vsel %vm748, %v749, %v741
    %v751 = vsel %vm744, %v747, %v750
    %v752 = vsel %vm742, nan, %v751
    %v753 = vand.u32 2147483647, %v439
    %vm754 = vcmp.le.f32.partialorder %v753, 0.7853982
    %vm755 = vcmp.lt.s32.totalorder %v439, 0
    %v756 = vand.u32 %v439, 2139095040
    %v757 = vshrl.u32 %v756, 23
    %v758 = vsub.s32 %v757, 127
    %v759 = vand.u32 2147483647, %v439
    %v760 = vand.u32 %v759, 8388607
    %v761 = vor.u32 %v760, 8388608
    %v762 = vsub.s32 0, %v761
    %v763 = vadd.s32 %v758, 1
    %vm764 = vcmp.gt.s32.totalorder %v763, 0
    %v765 = vsel %vm764, %v763, 0
    %v766 = vshrl.u32 %v765, 5
    %v767 = vand.u32 %v765, 31
    %v768 = vsub.s32 32, %v767
    %v769 = vshrl.u32 683565275, %v768
    %v770 = vshll.u32 683565275, %v767
    %v771 = vshrl.u32 2475754826, %v768
    %v772 = vor.u32 %v770, %v771
    %v773 = vshll.u32 2475754826, %v767
    %v774 = vshrl.u32 2131351028, %v768
    %v775 = vor.u32 %v773, %v774
    %v776 = vshll.u32 2131351028, %v767
    %v777 = vshrl.u32 2102212464, %v768
    %v778 = vor.u32 %v776, %v777
    %v779 = vshll.u32 2102212464, %v767
    %v780 = vshrl.u32 920167782, %v768
    %v781 = vor.u32 %v779, %v780
    %v782 = vshll.u32 920167782, %v767
    %v783 = vshrl.u32 1326507024, %v768
    %v784 = vor.u32 %v782, %v783
    %vm785 = vcmp.lt.s32.totalorder %v766, 1
    %vm786 = vcmp.lt.s32.totalorder %v766, 2
    %vm787 = vcmp.lt.s32.totalorder %v766, 3
    %vm788 = vcmp.lt.s32.totalorder %v766, 4
    %v789 = vsel %vm785, %v769, %v772
    %v790 = vsel %vm788, %v778, 2102212464
    %v791 = vsel %vm787, %v775, %v790
    %v792 = vsel %vm786, %v789, %v791
    %v793 = vsel %vm785, %v772, %v775
    %v794 = vsel %vm788, %v781, 920167782
    %v795 = vsel %vm787, %v778, %v794
    %v796 = vsel %vm786, %v793, %v795
    %v797 = vsel %vm785, %v775, %v778
    %v798 = vsel %vm788, %v784, 1326507024
    %v799 = vsel %vm787, %v781, %v798
    %v800 = vsel %vm786, %v797, %v799
    %v801 = vshll.u32 %v761, 8
    %v802 = vmul.u32.u64.compose %v801, %v800
    %v803 = vextract.low.u32 %v802
    %v804 = vextract.high.u32 %v802
    %v805 = vmul.u32.u64.compose %v801, %v796
    %v806 = vextract.low.u32 %v805
    %v807 = vextract.high.u32 %v805
    %v808 = vmul.u32 %v801, %v792
    %v809 = vadd.s32 %v804, %v806
    %vm810 = vc.u32 %v804, %v806
    %v811 = vadd.s32 %v807, 1
    %v812 = vsel %vm810, %v811, %v807
    %v813 = vadd.s32 %v808, %v812
    %v814 = vadd.s32 %v813, 536870912
    %v815 = vshrl.u32 %v814, 30
    %v816 = vshll.u32 %v815, 30
    %v817 = vsub.s32 %v813, %v816
    %vm818 = vcmp.lt.s32.totalorder %v817, 0
    %v819 = vsub.s32 0, %v817
    %v820 = vsel %vm818, %v819, %v817
    %v821 = vclz %v820
    %v822 = vsub.s32 %v821, 2
    %vm823 = vcmp.gt.s32.totalorder 0, %v822
    %v824 = vsel %vm823, 0, %v822
    %v825 = vsub.s32 32, %v824
    %v826 = vshll.u32 %v817, %v824
    %v827 = vshrl.u32 %v809, %v825
    %v828 = vor.u32 %v826, %v827
    %v829 = vsub.s32 4294967266, %v824
    %v830 = vadd.s32 %v829, 127
    %v831 = vshll.u32 %v830, 23
    %v832 = vor.u32 4788187, %v831
    %v833 = vand.u32 2147483647, %v832
    %v835 = vcvt.s32.f32 %v828
    %v836 = vmul.f32 %v835, %v833
    %v837 = vxor.u32 %v836, 2147483648
    %v838 = vsel %vm755, %v837, %v836
    %v839 = vsub.s32 4, %v815
    %v840 = vsel %vm755, %v839, %v815
    %v841 = vsel %vm754, %v439, %v838
    %v842 = vsel %vm754, 0, %v840
    %v843 = vcosq.f32.pop %v841
    %v844 = vsinq.f32.pop %v841
    %vm845 = vweird.f32 %v439
    %v846 = vand.u32 %v842, 3
    %vm847 = vcmp.lt.s32.totalorder %v846, 2
    %vm848 = vcmp.eq.s32.totalorder %v846, 0
    %v849 = vxor.u32 %v844, 2147483648
    %v850 = vsel %vm848, %v843, %v849
    %vm851 = vcmp.eq.s32.totalorder %v846, 2
    %v852 = vxor.u32 %v843, 2147483648
    %v853 = vsel %vm851, %v852, %v844
    %v854 = vsel %vm847, %v850, %v853
    %v855 = vsel %vm845, nan, %v854
    %v856 = vmul.f32 %v752, %v15
    %v857 = vmul.f32 %v855, %v15
    %v858 = vmul.f32 %v16, 12.566371
    %v859 = vmul.f32 %v17, 12.566371
    %v860 = vand.u32 2147483647, %v858
    %vm861 = vcmp.le.f32.partialorder %v860, 0.7853982
    %vm862 = vcmp.lt.s32.totalorder %v858, 0
    %v863 = vand.u32 %v858, 2139095040
    %v864 = vshrl.u32 %v863, 23
    %v865 = vsub.s32 %v864, 127
    %v866 = vand.u32 2147483647, %v858
    %v867 = vand.u32 %v866, 8388607
    %v868 = vor.u32 %v867, 8388608
    %v869 = vsub.s32 0, %v868
    %v870 = vadd.s32 %v865, 1
    %vm871 = vcmp.gt.s32.totalorder %v870, 0
    %v872 = vsel %vm871, %v870, 0
    %v873 = vshrl.u32 %v872, 5
    %v874 = vand.u32 %v872, 31
    %v875 = vsub.s32 32, %v874
    %v876 = vshrl.u32 683565275, %v875
    %v877 = vshll.u32 683565275, %v874
    %v878 = vshrl.u32 2475754826, %v875
    %v879 = vor.u32 %v877, %v878
    %v880 = vshll.u32 2475754826, %v874
    %v881 = vshrl.u32 2131351028, %v875
    %v882 = vor.u32 %v880, %v881
    %v883 = vshll.u32 2131351028, %v874
    %v884 = vshrl.u32 2102212464, %v875
    %v885 = vor.u32 %v883, %v884
    %v886 = vshll.u32 2102212464, %v874
    %v887 = vshrl.u32 920167782, %v875
    %v888 = vor.u32 %v886, %v887
    %v889 = vshll.u32 920167782, %v874
    %v890 = vshrl.u32 1326507024, %v875
    %v891 = vor.u32 %v889, %v890
    %vm892 = vcmp.lt.s32.totalorder %v873, 1
    %vm893 = vcmp.lt.s32.totalorder %v873, 2
    %vm894 = vcmp.lt.s32.totalorder %v873, 3
    %vm895 = vcmp.lt.s32.totalorder %v873, 4
    %v896 = vsel %vm892, %v876, %v879
    %v897 = vsel %vm895, %v885, 2102212464
    %v898 = vsel %vm894, %v882, %v897
    %v899 = vsel %vm893, %v896, %v898
    %v900 = vsel %vm892, %v879, %v882
    %v901 = vsel %vm895, %v888, 920167782
    %v902 = vsel %vm894, %v885, %v901
    %v903 = vsel %vm893, %v900, %v902
    %v904 = vsel %vm892, %v882, %v885
    %v905 = vsel %vm895, %v891, 1326507024
    %v906 = vsel %vm894, %v888, %v905
    %v907 = vsel %vm893, %v904, %v906
    %v908 = vshll.u32 %v868, 8
    %v909 = vmul.u32.u64.compose %v908, %v907
    %v910 = vextract.low.u32 %v909
    %v911 = vextract.high.u32 %v909
    %v912 = vmul.u32.u64.compose %v908, %v903
    %v913 = vextract.low.u32 %v912
    %v914 = vextract.high.u32 %v912
    %v915 = vmul.u32 %v908, %v899
    %v916 = vadd.s32 %v911, %v913
    %vm917 = vc.u32 %v911, %v913
    %v918 = vadd.s32 %v914, 1
    %v919 = vsel %vm917, %v918, %v914
    %v920 = vadd.s32 %v915, %v919
    %v921 = vadd.s32 %v920, 536870912
    %v922 = vshrl.u32 %v921, 30
    %v923 = vshll.u32 %v922, 30
    %v924 = vsub.s32 %v920, %v923
    %vm925 = vcmp.lt.s32.totalorder %v924, 0
    %v926 = vsub.s32 0, %v924
    %v927 = vsel %vm925, %v926, %v924
    %v928 = vclz %v927
    %v929 = vsub.s32 %v928, 2
    %vm930 = vcmp.gt.s32.totalorder 0, %v929
    %v931 = vsel %vm930, 0, %v929
    %v932 = vsub.s32 32, %v931
    %v933 = vshll.u32 %v924, %v931
    %v934 = vshrl.u32 %v916, %v932
    %v935 = vor.u32 %v933, %v934
    %v936 = vsub.s32 4294967266, %v931
    %v937 = vadd.s32 %v936, 127
    %v938 = vshll.u32 %v937, 23
    %v939 = vor.u32 4788187, %v938
    %v940 = vand.u32 2147483647, %v939
    %v942 = vcvt.s32.f32 %v935
    %v943 = vmul.f32 %v942, %v940
    %v944 = vxor.u32 %v943, 2147483648
    %v945 = vsel %vm862, %v944, %v943
    %v946 = vsub.s32 4, %v922
    %v947 = vsel %vm862, %v946, %v922
    %v948 = vsel %vm861, %v858, %v945
    %v949 = vsel %vm861, 0, %v947
    %v950 = vcosq.f32.pop %v948
    %v951 = vsinq.f32.pop %v948
    %vm952 = vweird.f32 %v858
    %v953 = vadd.s32 %v949, 3
    %v954 = vand.u32 %v953, 3
    %vm955 = vcmp.lt.s32.totalorder %v954, 2
    %vm956 = vcmp.eq.s32.totalorder %v954, 0
    %v957 = vxor.u32 %v951, 2147483648
    %v958 = vsel %vm956, %v950, %v957
    %vm959 = vcmp.eq.s32.totalorder %v954, 2
    %v960 = vxor.u32 %v950, 2147483648
    %v961 = vsel %vm959, %v960, %v951
    %v962 = vsel %vm955, %v958, %v961
    %v963 = vsel %vm952, nan, %v962
    %v964 = vand.u32 2147483647, %v859
    %vm965 = vcmp.le.f32.partialorder %v964, 0.7853982
    %vm966 = vcmp.lt.s32.totalorder %v859, 0
    %v967 = vand.u32 %v859, 2139095040
    %v968 = vshrl.u32 %v967, 23
    %v969 = vsub.s32 %v968, 127
    %v970 = vand.u32 2147483647, %v859
    %v971 = vand.u32 %v970, 8388607
    %v972 = vor.u32 %v971, 8388608
    %v973 = vsub.s32 0, %v972
    %v974 = vadd.s32 %v969, 1
    %vm975 = vcmp.gt.s32.totalorder %v974, 0
    %v976 = vsel %vm975, %v974, 0
    %v977 = vshrl.u32 %v976, 5
    %v978 = vand.u32 %v976, 31
    %v979 = vsub.s32 32, %v978
    %v980 = vshrl.u32 683565275, %v979
    %v981 = vshll.u32 683565275, %v978
    %v982 = vshrl.u32 2475754826, %v979
    %v983 = vor.u32 %v981, %v982
    %v984 = vshll.u32 2475754826, %v978
    %v985 = vshrl.u32 2131351028, %v979
    %v986 = vor.u32 %v984, %v985
    %v987 = vshll.u32 2131351028, %v978
    %v988 = vshrl.u32 2102212464, %v979
    %v989 = vor.u32 %v987, %v988
    %v990 = vshll.u32 2102212464, %v978
    %v991 = vshrl.u32 920167782, %v979
    %v992 = vor.u32 %v990, %v991
    %v993 = vshll.u32 920167782, %v978
    %v994 = vshrl.u32 1326507024, %v979
    %v995 = vor.u32 %v993, %v994
    %vm996 = vcmp.lt.s32.totalorder %v977, 1
    %vm997 = vcmp.lt.s32.totalorder %v977, 2
    %vm998 = vcmp.lt.s32.totalorder %v977, 3
    %vm999 = vcmp.lt.s32.totalorder %v977, 4
    %v1000 = vsel %vm996, %v980, %v983
    %v1001 = vsel %vm999, %v989, 2102212464
    %v1002 = vsel %vm998, %v986, %v1001
    %v1003 = vsel %vm997, %v1000, %v1002
    %v1004 = vsel %vm996, %v983, %v986
    %v1005 = vsel %vm999, %v992, 920167782
    %v1006 = vsel %vm998, %v989, %v1005
    %v1007 = vsel %vm997, %v1004, %v1006
    %v1008 = vsel %vm996, %v986, %v989
    %v1009 = vsel %vm999, %v995, 1326507024
    %v1010 = vsel %vm998, %v992, %v1009
    %v1011 = vsel %vm997, %v1008, %v1010
    %v1012 = vshll.u32 %v972, 8
    %v1013 = vmul.u32.u64.compose %v1012, %v1011
    %v1014 = vextract.low.u32 %v1013
    %v1015 = vextract.high.u32 %v1013
    %v1016 = vmul.u32.u64.compose %v1012, %v1007
    %v1017 = vextract.low.u32 %v1016
    %v1018 = vextract.high.u32 %v1016
    %v1019 = vmul.u32 %v1012, %v1003
    %v1020 = vadd.s32 %v1015, %v1017
    %vm1021 = vc.u32 %v1015, %v1017
    %v1022 = vadd.s32 %v1018, 1
    %v1023 = vsel %vm1021, %v1022, %v1018
    %v1024 = vadd.s32 %v1019, %v1023
    %v1025 = vadd.s32 %v1024, 536870912
    %v1026 = vshrl.u32 %v1025, 30
    %v1027 = vshll.u32 %v1026, 30
    %v1028 = vsub.s32 %v1024, %v1027
    %vm1029 = vcmp.lt.s32.totalorder %v1028, 0
    %v1030 = vsub.s32 0, %v1028
    %v1031 = vsel %vm1029, %v1030, %v1028
    %v1032 = vclz %v1031
    %v1033 = vsub.s32 %v1032, 2
    %vm1034 = vcmp.gt.s32.totalorder 0, %v1033
    %v1035 = vsel %vm1034, 0, %v1033
    %v1036 = vsub.s32 32, %v1035
    %v1037 = vshll.u32 %v1028, %v1035
    %v1038 = vshrl.u32 %v1020, %v1036
    %v1039 = vor.u32 %v1037, %v1038
    %v1040 = vsub.s32 4294967266, %v1035
    %v1041 = vadd.s32 %v1040, 127
    %v1042 = vshll.u32 %v1041, 23
    %v1043 = vor.u32 4788187, %v1042
    %v1044 = vand.u32 2147483647, %v1043
    %v1046 = vcvt.s32.f32 %v1039
    %v1047 = vmul.f32 %v1046, %v1044
    %v1048 = vxor.u32 %v1047, 2147483648
    %v1049 = vsel %vm966, %v1048, %v1047
    %v1050 = vsub.s32 4, %v1026
    %v1051 = vsel %vm966, %v1050, %v1026
    %v1052 = vsel %vm965, %v859, %v1049
    %v1053 = vsel %vm965, 0, %v1051
    %v1054 = vcosq.f32.pop %v1052
    %v1055 = vsinq.f32.pop %v1052
    %vm1056 = vweird.f32 %v859
    %v1057 = vadd.s32 %v1053, 3
    %v1058 = vand.u32 %v1057, 3
    %vm1059 = vcmp.lt.s32.totalorder %v1058, 2
    %vm1060 = vcmp.eq.s32.totalorder %v1058, 0
    %v1061 = vxor.u32 %v1055, 2147483648
    %v1062 = vsel %vm1060, %v1054, %v1061
    %vm1063 = vcmp.eq.s32.totalorder %v1058, 2
    %v1064 = vxor.u32 %v1054, 2147483648
    %v1065 = vsel %vm1063, %v1064, %v1055
    %v1066 = vsel %vm1059, %v1062, %v1065
    %v1067 = vsel %vm1056, nan, %v1066
    %v1068 = vmul.f32 %v963, %v15
    %v1069 = vmul.f32 %v1067, %v15
    %v1070 = vand.u32 2147483647, %v858
    %vm1071 = vcmp.le.f32.partialorder %v1070, 0.7853982
    %vm1072 = vcmp.lt.s32.totalorder %v858, 0
    %v1073 = vand.u32 %v858, 2139095040
    %v1074 = vshrl.u32 %v1073, 23
    %v1075 = vsub.s32 %v1074, 127
    %v1076 = vand.u32 2147483647, %v858
    %v1077 = vand.u32 %v1076, 8388607
    %v1078 = vor.u32 %v1077, 8388608
    %v1079 = vsub.s32 0, %v1078
    %v1080 = vadd.s32 %v1075, 1
    %vm1081 = vcmp.gt.s32.totalorder %v1080, 0
    %v1082 = vsel %vm1081, %v1080, 0
    %v1083 = vshrl.u32 %v1082, 5
    %v1084 = vand.u32 %v1082, 31
    %v1085 = vsub.s32 32, %v1084
    %v1086 = vshrl.u32 683565275, %v1085
    %v1087 = vshll.u32 683565275, %v1084
    %v1088 = vshrl.u32 2475754826, %v1085
    %v1089 = vor.u32 %v1087, %v1088
    %v1090 = vshll.u32 2475754826, %v1084
    %v1091 = vshrl.u32 2131351028, %v1085
    %v1092 = vor.u32 %v1090, %v1091
    %v1093 = vshll.u32 2131351028, %v1084
    %v1094 = vshrl.u32 2102212464, %v1085
    %v1095 = vor.u32 %v1093, %v1094
    %v1096 = vshll.u32 2102212464, %v1084
    %v1097 = vshrl.u32 920167782, %v1085
    %v1098 = vor.u32 %v1096, %v1097
    %v1099 = vshll.u32 920167782, %v1084
    %v1100 = vshrl.u32 1326507024, %v1085
    %v1101 = vor.u32 %v1099, %v1100
    %vm1102 = vcmp.lt.s32.totalorder %v1083, 1
    %vm1103 = vcmp.lt.s32.totalorder %v1083, 2
    %vm1104 = vcmp.lt.s32.totalorder %v1083, 3
    %vm1105 = vcmp.lt.s32.totalorder %v1083, 4
    %v1106 = vsel %vm1102, %v1086, %v1089
    %v1107 = vsel %vm1105, %v1095, 2102212464
    %v1108 = vsel %vm1104, %v1092, %v1107
    %v1109 = vsel %vm1103, %v1106, %v1108
    %v1110 = vsel %vm1102, %v1089, %v1092
    %v1111 = vsel %vm1105, %v1098, 920167782
    %v1112 = vsel %vm1104, %v1095, %v1111
    %v1113 = vsel %vm1103, %v1110, %v1112
    %v1114 = vsel %vm1102, %v1092, %v1095
    %v1115 = vsel %vm1105, %v1101, 1326507024
    %v1116 = vsel %vm1104, %v1098, %v1115
    %v1117 = vsel %vm1103, %v1114, %v1116
    %v1118 = vshll.u32 %v1078, 8
    %v1119 = vmul.u32.u64.compose %v1118, %v1117
    %v1120 = vextract.low.u32 %v1119
    %v1121 = vextract.high.u32 %v1119
    %v1122 = vmul.u32.u64.compose %v1118, %v1113
    %v1123 = vextract.low.u32 %v1122
    %v1124 = vextract.high.u32 %v1122
    %v1125 = vmul.u32 %v1118, %v1109
    %v1126 = vadd.s32 %v1121, %v1123
    %vm1127 = vc.u32 %v1121, %v1123
    %v1128 = vadd.s32 %v1124, 1
    %v1129 = vsel %vm1127, %v1128, %v1124
    %v1130 = vadd.s32 %v1125, %v1129
    %v1131 = vadd.s32 %v1130, 536870912
    %v1132 = vshrl.u32 %v1131, 30
    %v1133 = vshll.u32 %v1132, 30
    %v1134 = vsub.s32 %v1130, %v1133
    %vm1135 = vcmp.lt.s32.totalorder %v1134, 0
    %v1136 = vsub.s32 0, %v1134
    %v1137 = vsel %vm1135, %v1136, %v1134
    %v1138 = vclz %v1137
    %v1139 = vsub.s32 %v1138, 2
    %vm1140 = vcmp.gt.s32.totalorder 0, %v1139
    %v1141 = vsel %vm1140, 0, %v1139
    %v1142 = vsub.s32 32, %v1141
    %v1143 = vshll.u32 %v1134, %v1141
    %v1144 = vshrl.u32 %v1126, %v1142
    %v1145 = vor.u32 %v1143, %v1144
    %v1146 = vsub.s32 4294967266, %v1141
    %v1147 = vadd.s32 %v1146, 127
    %v1148 = vshll.u32 %v1147, 23
    %v1149 = vor.u32 4788187, %v1148
    %v1150 = vand.u32 2147483647, %v1149
    %v1152 = vcvt.s32.f32 %v1145
    %v1153 = vmul.f32 %v1152, %v1150
    %v1154 = vxor.u32 %v1153, 2147483648
    %v1155 = vsel %vm1072, %v1154, %v1153
    %v1156 = vsub.s32 4, %v1132
    %v1157 = vsel %vm1072, %v1156, %v1132
    %v1158 = vsel %vm1071, %v858, %v1155
    %v1159 = vsel %vm1071, 0, %v1157
    %v1160 = vcosq.f32.pop %v1158
    %v1161 = vsinq.f32.pop %v1158
    %vm1162 = vweird.f32 %v858
    %v1163 = vand.u32 %v1159, 3
    %vm1164 = vcmp.lt.s32.totalorder %v1163, 2
    %vm1165 = vcmp.eq.s32.totalorder %v1163, 0
    %v1166 = vxor.u32 %v1161, 2147483648
    %v1167 = vsel %vm1165, %v1160, %v1166
    %vm1168 = vcmp.eq.s32.totalorder %v1163, 2
    %v1169 = vxor.u32 %v1160, 2147483648
    %v1170 = vsel %vm1168, %v1169, %v1161
    %v1171 = vsel %vm1164, %v1167, %v1170
    %v1172 = vsel %vm1162, nan, %v1171
    %v1173 = vand.u32 2147483647, %v859
    %vm1174 = vcmp.le.f32.partialorder %v1173, 0.7853982
    %vm1175 = vcmp.lt.s32.totalorder %v859, 0
    %v1176 = vand.u32 %v859, 2139095040
    %v1177 = vshrl.u32 %v1176, 23
    %v1178 = vsub.s32 %v1177, 127
    %v1179 = vand.u32 2147483647, %v859
    %v1180 = vand.u32 %v1179, 8388607
    %v1181 = vor.u32 %v1180, 8388608
    %v1182 = vsub.s32 0, %v1181
    %v1183 = vadd.s32 %v1178, 1
    %vm1184 = vcmp.gt.s32.totalorder %v1183, 0
    %v1185 = vsel %vm1184, %v1183, 0
    %v1186 = vshrl.u32 %v1185, 5
    %v1187 = vand.u32 %v1185, 31
    %v1188 = vsub.s32 32, %v1187
    %v1189 = vshrl.u32 683565275, %v1188
    %v1190 = vshll.u32 683565275, %v1187
    %v1191 = vshrl.u32 2475754826, %v1188
    %v1192 = vor.u32 %v1190, %v1191
    %v1193 = vshll.u32 2475754826, %v1187
    %v1194 = vshrl.u32 2131351028, %v1188
    %v1195 = vor.u32 %v1193, %v1194
    %v1196 = vshll.u32 2131351028, %v1187
    %v1197 = vshrl.u32 2102212464, %v1188
    %v1198 = vor.u32 %v1196, %v1197
    %v1199 = vshll.u32 2102212464, %v1187
    %v1200 = vshrl.u32 920167782, %v1188
    %v1201 = vor.u32 %v1199, %v1200
    %v1202 = vshll.u32 920167782, %v1187
    %v1203 = vshrl.u32 1326507024, %v1188
    %v1204 = vor.u32 %v1202, %v1203
    %vm1205 = vcmp.lt.s32.totalorder %v1186, 1
    %vm1206 = vcmp.lt.s32.totalorder %v1186, 2
    %vm1207 = vcmp.lt.s32.totalorder %v1186, 3
    %vm1208 = vcmp.lt.s32.totalorder %v1186, 4
    %v1209 = vsel %vm1205, %v1189, %v1192
    %v1210 = vsel %vm1208, %v1198, 2102212464
    %v1211 = vsel %vm1207, %v1195, %v1210
    %v1212 = vsel %vm1206, %v1209, %v1211
    %v1213 = vsel %vm1205, %v1192, %v1195
    %v1214 = vsel %vm1208, %v1201, 920167782
    %v1215 = vsel %vm1207, %v1198, %v1214
    %v1216 = vsel %vm1206, %v1213, %v1215
    %v1217 = vsel %vm1205, %v1195, %v1198
    %v1218 = vsel %vm1208, %v1204, 1326507024
    %v1219 = vsel %vm1207, %v1201, %v1218
    %v1220 = vsel %vm1206, %v1217, %v1219
    %v1221 = vshll.u32 %v1181, 8
    %v1222 = vmul.u32.u64.compose %v1221, %v1220
    %v1223 = vextract.low.u32 %v1222
    %v1224 = vextract.high.u32 %v1222
    %v1225 = vmul.u32.u64.compose %v1221, %v1216
    %v1226 = vextract.low.u32 %v1225
    %v1227 = vextract.high.u32 %v1225
    %v1228 = vmul.u32 %v1221, %v1212
    %v1229 = vadd.s32 %v1224, %v1226
    %vm1230 = vc.u32 %v1224, %v1226
    %v1231 = vadd.s32 %v1227, 1
    %v1232 = vsel %vm1230, %v1231, %v1227
    %v1233 = vadd.s32 %v1228, %v1232
    %v1234 = vadd.s32 %v1233, 536870912
    %v1235 = vshrl.u32 %v1234, 30
    %v1236 = vshll.u32 %v1235, 30
    %v1237 = vsub.s32 %v1233, %v1236
    %vm1238 = vcmp.lt.s32.totalorder %v1237, 0
    %v1239 = vsub.s32 0, %v1237
    %v1240 = vsel %vm1238, %v1239, %v1237
    %v1241 = vclz %v1240
    %v1242 = vsub.s32 %v1241, 2
    %vm1243 = vcmp.gt.s32.totalorder 0, %v1242
    %v1244 = vsel %vm1243, 0, %v1242
    %v1245 = vsub.s32 32, %v1244
    %v1246 = vshll.u32 %v1237, %v1244
    %v1247 = vshrl.u32 %v1229, %v1245
    %v1248 = vor.u32 %v1246, %v1247
    %v1249 = vsub.s32 4294967266, %v1244
    %v1250 = vadd.s32 %v1249, 127
    %v1251 = vshll.u32 %v1250, 23
    %v1252 = vor.u32 4788187, %v1251
    %v1253 = vand.u32 2147483647, %v1252
    %v1255 = vcvt.s32.f32 %v1248
    %v1256 = vmul.f32 %v1255, %v1253
    %v1257 = vxor.u32 %v1256, 2147483648
    %v1258 = vsel %vm1175, %v1257, %v1256
    %v1259 = vsub.s32 4, %v1235
    %v1260 = vsel %vm1175, %v1259, %v1235
    %v1261 = vsel %vm1174, %v859, %v1258
    %v1262 = vsel %vm1174, 0, %v1260
    %v1263 = vcosq.f32.pop %v1261
    %v1264 = vsinq.f32.pop %v1261
    %vm1265 = vweird.f32 %v859
    %v1266 = vand.u32 %v1262, 3
    %vm1267 = vcmp.lt.s32.totalorder %v1266, 2
    %vm1268 = vcmp.eq.s32.totalorder %v1266, 0
    %v1269 = vxor.u32 %v1264, 2147483648
    %v1270 = vsel %vm1268, %v1263, %v1269
    %vm1271 = vcmp.eq.s32.totalorder %v1266, 2
    %v1272 = vxor.u32 %v1263, 2147483648
    %v1273 = vsel %vm1271, %v1272, %v1264
    %v1274 = vsel %vm1267, %v1270, %v1273
    %v1275 = vsel %vm1265, nan, %v1274
    %v1276 = vmul.f32 %v1172, %v15
    %v1277 = vmul.f32 %v1275, %v15
    %v1278 = vmul.f32 %v16, 25.132742
    %v1279 = vmul.f32 %v17, 25.132742
    %v1280 = vand.u32 2147483647, %v1278
    %vm1281 = vcmp.le.f32.partialorder %v1280, 0.7853982
    %vm1282 = vcmp.lt.s32.totalorder %v1278, 0
    %v1283 = vand.u32 %v1278, 2139095040
    %v1284 = vshrl.u32 %v1283, 23
    %v1285 = vsub.s32 %v1284, 127
    %v1286 = vand.u32 2147483647, %v1278
    %v1287 = vand.u32 %v1286, 8388607
    %v1288 = vor.u32 %v1287, 8388608
    %v1289 = vsub.s32 0, %v1288
    %v1290 = vadd.s32 %v1285, 1
    %vm1291 = vcmp.gt.s32.totalorder %v1290, 0
    %v1292 = vsel %vm1291, %v1290, 0
    %v1293 = vshrl.u32 %v1292, 5
    %v1294 = vand.u32 %v1292, 31
    %v1295 = vsub.s32 32, %v1294
    %v1296 = vshrl.u32 683565275, %v1295
    %v1297 = vshll.u32 683565275, %v1294
    %v1298 = vshrl.u32 2475754826, %v1295
    %v1299 = vor.u32 %v1297, %v1298
    %v1300 = vshll.u32 2475754826, %v1294
    %v1301 = vshrl.u32 2131351028, %v1295
    %v1302 = vor.u32 %v1300, %v1301
    %v1303 = vshll.u32 2131351028, %v1294
    %v1304 = vshrl.u32 2102212464, %v1295
    %v1305 = vor.u32 %v1303, %v1304
    %v1306 = vshll.u32 2102212464, %v1294
    %v1307 = vshrl.u32 920167782, %v1295
    %v1308 = vor.u32 %v1306, %v1307
    %v1309 = vshll.u32 920167782, %v1294
    %v1310 = vshrl.u32 1326507024, %v1295
    %v1311 = vor.u32 %v1309, %v1310
    %vm1312 = vcmp.lt.s32.totalorder %v1293, 1
    %vm1313 = vcmp.lt.s32.totalorder %v1293, 2
    %vm1314 = vcmp.lt.s32.totalorder %v1293, 3
    %vm1315 = vcmp.lt.s32.totalorder %v1293, 4
    %v1316 = vsel %vm1312, %v1296, %v1299
    %v1317 = vsel %vm1315, %v1305, 2102212464
    %v1318 = vsel %vm1314, %v1302, %v1317
    %v1319 = vsel %vm1313, %v1316, %v1318
    %v1320 = vsel %vm1312, %v1299, %v1302
    %v1321 = vsel %vm1315, %v1308, 920167782
    %v1322 = vsel %vm1314, %v1305, %v1321
    %v1323 = vsel %vm1313, %v1320, %v1322
    %v1324 = vsel %vm1312, %v1302, %v1305
    %v1325 = vsel %vm1315, %v1311, 1326507024
    %v1326 = vsel %vm1314, %v1308, %v1325
    %v1327 = vsel %vm1313, %v1324, %v1326
    %v1328 = vshll.u32 %v1288, 8
    %v1329 = vmul.u32.u64.compose %v1328, %v1327
    %v1330 = vextract.low.u32 %v1329
    %v1331 = vextract.high.u32 %v1329
    %v1332 = vmul.u32.u64.compose %v1328, %v1323
    %v1333 = vextract.low.u32 %v1332
    %v1334 = vextract.high.u32 %v1332
    %v1335 = vmul.u32 %v1328, %v1319
    %v1336 = vadd.s32 %v1331, %v1333
    %vm1337 = vc.u32 %v1331, %v1333
    %v1338 = vadd.s32 %v1334, 1
    %v1339 = vsel %vm1337, %v1338, %v1334
    %v1340 = vadd.s32 %v1335, %v1339
    %v1341 = vadd.s32 %v1340, 536870912
    %v1342 = vshrl.u32 %v1341, 30
    %v1343 = vshll.u32 %v1342, 30
    %v1344 = vsub.s32 %v1340, %v1343
    %vm1345 = vcmp.lt.s32.totalorder %v1344, 0
    %v1346 = vsub.s32 0, %v1344
    %v1347 = vsel %vm1345, %v1346, %v1344
    %v1348 = vclz %v1347
    %v1349 = vsub.s32 %v1348, 2
    %vm1350 = vcmp.gt.s32.totalorder 0, %v1349
    %v1351 = vsel %vm1350, 0, %v1349
    %v1352 = vsub.s32 32, %v1351
    %v1353 = vshll.u32 %v1344, %v1351
    %v1354 = vshrl.u32 %v1336, %v1352
    %v1355 = vor.u32 %v1353, %v1354
    %v1356 = vsub.s32 4294967266, %v1351
    %v1357 = vadd.s32 %v1356, 127
    %v1358 = vshll.u32 %v1357, 23
    %v1359 = vor.u32 4788187, %v1358
    %v1360 = vand.u32 2147483647, %v1359
    %v1362 = vcvt.s32.f32 %v1355
    %v1363 = vmul.f32 %v1362, %v1360
    %v1364 = vxor.u32 %v1363, 2147483648
    %v1365 = vsel %vm1282, %v1364, %v1363
    %v1366 = vsub.s32 4, %v1342
    %v1367 = vsel %vm1282, %v1366, %v1342
    %v1368 = vsel %vm1281, %v1278, %v1365
    %v1369 = vsel %vm1281, 0, %v1367
    %v1370 = vcosq.f32.pop %v1368
    %v1371 = vsinq.f32.pop %v1368
    %vm1372 = vweird.f32 %v1278
    %v1373 = vadd.s32 %v1369, 3
    %v1374 = vand.u32 %v1373, 3
    %vm1375 = vcmp.lt.s32.totalorder %v1374, 2
    %vm1376 = vcmp.eq.s32.totalorder %v1374, 0
    %v1377 = vxor.u32 %v1371, 2147483648
    %v1378 = vsel %vm1376, %v1370, %v1377
    %vm1379 = vcmp.eq.s32.totalorder %v1374, 2
    %v1380 = vxor.u32 %v1370, 2147483648
    %v1381 = vsel %vm1379, %v1380, %v1371
    %v1382 = vsel %vm1375, %v1378, %v1381
    %v1383 = vsel %vm1372, nan, %v1382
    %v1384 = vand.u32 2147483647, %v1279
    %vm1385 = vcmp.le.f32.partialorder %v1384, 0.7853982
    %vm1386 = vcmp.lt.s32.totalorder %v1279, 0
    %v1387 = vand.u32 %v1279, 2139095040
    %v1388 = vshrl.u32 %v1387, 23
    %v1389 = vsub.s32 %v1388, 127
    %v1390 = vand.u32 2147483647, %v1279
    %v1391 = vand.u32 %v1390, 8388607
    %v1392 = vor.u32 %v1391, 8388608
    %v1393 = vsub.s32 0, %v1392
    %v1394 = vadd.s32 %v1389, 1
    %vm1395 = vcmp.gt.s32.totalorder %v1394, 0
    %v1396 = vsel %vm1395, %v1394, 0
    %v1397 = vshrl.u32 %v1396, 5
    %v1398 = vand.u32 %v1396, 31
    %v1399 = vsub.s32 32, %v1398
    %v1400 = vshrl.u32 683565275, %v1399
    %v1401 = vshll.u32 683565275, %v1398
    %v1402 = vshrl.u32 2475754826, %v1399
    %v1403 = vor.u32 %v1401, %v1402
    %v1404 = vshll.u32 2475754826, %v1398
    %v1405 = vshrl.u32 2131351028, %v1399
    %v1406 = vor.u32 %v1404, %v1405
    %v1407 = vshll.u32 2131351028, %v1398
    %v1408 = vshrl.u32 2102212464, %v1399
    %v1409 = vor.u32 %v1407, %v1408
    %v1410 = vshll.u32 2102212464, %v1398
    %v1411 = vshrl.u32 920167782, %v1399
    %v1412 = vor.u32 %v1410, %v1411
    %v1413 = vshll.u32 920167782, %v1398
    %v1414 = vshrl.u32 1326507024, %v1399
    %v1415 = vor.u32 %v1413, %v1414
    %vm1416 = vcmp.lt.s32.totalorder %v1397, 1
    %vm1417 = vcmp.lt.s32.totalorder %v1397, 2
    %vm1418 = vcmp.lt.s32.totalorder %v1397, 3
    %vm1419 = vcmp.lt.s32.totalorder %v1397, 4
    %v1420 = vsel %vm1416, %v1400, %v1403
    %v1421 = vsel %vm1419, %v1409, 2102212464
    %v1422 = vsel %vm1418, %v1406, %v1421
    %v1423 = vsel %vm1417, %v1420, %v1422
    %v1424 = vsel %vm1416, %v1403, %v1406
    %v1425 = vsel %vm1419, %v1412, 920167782
    %v1426 = vsel %vm1418, %v1409, %v1425
    %v1427 = vsel %vm1417, %v1424, %v1426
    %v1428 = vsel %vm1416, %v1406, %v1409
    %v1429 = vsel %vm1419, %v1415, 1326507024
    %v1430 = vsel %vm1418, %v1412, %v1429
    %v1431 = vsel %vm1417, %v1428, %v1430
    %v1432 = vshll.u32 %v1392, 8
    %v1433 = vmul.u32.u64.compose %v1432, %v1431
    %v1434 = vextract.low.u32 %v1433
    %v1435 = vextract.high.u32 %v1433
    %v1436 = vmul.u32.u64.compose %v1432, %v1427
    %v1437 = vextract.low.u32 %v1436
    %v1438 = vextract.high.u32 %v1436
    %v1439 = vmul.u32 %v1432, %v1423
    %v1440 = vadd.s32 %v1435, %v1437
    %vm1441 = vc.u32 %v1435, %v1437
    %v1442 = vadd.s32 %v1438, 1
    %v1443 = vsel %vm1441, %v1442, %v1438
    %v1444 = vadd.s32 %v1439, %v1443
    %v1445 = vadd.s32 %v1444, 536870912
    %v1446 = vshrl.u32 %v1445, 30
    %v1447 = vshll.u32 %v1446, 30
    %v1448 = vsub.s32 %v1444, %v1447
    %vm1449 = vcmp.lt.s32.totalorder %v1448, 0
    %v1450 = vsub.s32 0, %v1448
    %v1451 = vsel %vm1449, %v1450, %v1448
    %v1452 = vclz %v1451
    %v1453 = vsub.s32 %v1452, 2
    %vm1454 = vcmp.gt.s32.totalorder 0, %v1453
    %v1455 = vsel %vm1454, 0, %v1453
    %v1456 = vsub.s32 32, %v1455
    %v1457 = vshll.u32 %v1448, %v1455
    %v1458 = vshrl.u32 %v1440, %v1456
    %v1459 = vor.u32 %v1457, %v1458
    %v1460 = vsub.s32 4294967266, %v1455
    %v1461 = vadd.s32 %v1460, 127
    %v1462 = vshll.u32 %v1461, 23
    %v1463 = vor.u32 4788187, %v1462
    %v1464 = vand.u32 2147483647, %v1463
    %v1466 = vcvt.s32.f32 %v1459
    %v1467 = vmul.f32 %v1466, %v1464
    %v1468 = vxor.u32 %v1467, 2147483648
    %v1469 = vsel %vm1386, %v1468, %v1467
    %v1470 = vsub.s32 4, %v1446
    %v1471 = vsel %vm1386, %v1470, %v1446
    %v1472 = vsel %vm1385, %v1279, %v1469
    %v1473 = vsel %vm1385, 0, %v1471
    %v1474 = vcosq.f32.pop %v1472
    %v1475 = vsinq.f32.pop %v1472
    %vm1476 = vweird.f32 %v1279
    %v1477 = vadd.s32 %v1473, 3
    %v1478 = vand.u32 %v1477, 3
    %vm1479 = vcmp.lt.s32.totalorder %v1478, 2
    %vm1480 = vcmp.eq.s32.totalorder %v1478, 0
    %v1481 = vxor.u32 %v1475, 2147483648
    %v1482 = vsel %vm1480, %v1474, %v1481
    %vm1483 = vcmp.eq.s32.totalorder %v1478, 2
    %v1484 = vxor.u32 %v1474, 2147483648
    %v1485 = vsel %vm1483, %v1484, %v1475
    %v1486 = vsel %vm1479, %v1482, %v1485
    %v1487 = vsel %vm1476, nan, %v1486
    %v1488 = vmul.f32 %v1383, %v15
    %v1489 = vmul.f32 %v1487, %v15
    %v1490 = vand.u32 2147483647, %v1278
    %vm1491 = vcmp.le.f32.partialorder %v1490, 0.7853982
    %vm1492 = vcmp.lt.s32.totalorder %v1278, 0
    %v1493 = vand.u32 %v1278, 2139095040
    %v1494 = vshrl.u32 %v1493, 23
    %v1495 = vsub.s32 %v1494, 127
    %v1496 = vand.u32 2147483647, %v1278
    %v1497 = vand.u32 %v1496, 8388607
    %v1498 = vor.u32 %v1497, 8388608
    %v1499 = vsub.s32 0, %v1498
    %v1500 = vadd.s32 %v1495, 1
    %vm1501 = vcmp.gt.s32.totalorder %v1500, 0
    %v1502 = vsel %vm1501, %v1500, 0
    %v1503 = vshrl.u32 %v1502, 5
    %v1504 = vand.u32 %v1502, 31
    %v1505 = vsub.s32 32, %v1504
    %v1506 = vshrl.u32 683565275, %v1505
    %v1507 = vshll.u32 683565275, %v1504
    %v1508 = vshrl.u32 2475754826, %v1505
    %v1509 = vor.u32 %v1507, %v1508
    %v1510 = vshll.u32 2475754826, %v1504
    %v1511 = vshrl.u32 2131351028, %v1505
    %v1512 = vor.u32 %v1510, %v1511
    %v1513 = vshll.u32 2131351028, %v1504
    %v1514 = vshrl.u32 2102212464, %v1505
    %v1515 = vor.u32 %v1513, %v1514
    %v1516 = vshll.u32 2102212464, %v1504
    %v1517 = vshrl.u32 920167782, %v1505
    %v1518 = vor.u32 %v1516, %v1517
    %v1519 = vshll.u32 920167782, %v1504
    %v1520 = vshrl.u32 1326507024, %v1505
    %v1521 = vor.u32 %v1519, %v1520
    %vm1522 = vcmp.lt.s32.totalorder %v1503, 1
    %vm1523 = vcmp.lt.s32.totalorder %v1503, 2
    %vm1524 = vcmp.lt.s32.totalorder %v1503, 3
    %vm1525 = vcmp.lt.s32.totalorder %v1503, 4
    %v1526 = vsel %vm1522, %v1506, %v1509
    %v1527 = vsel %vm1525, %v1515, 2102212464
    %v1528 = vsel %vm1524, %v1512, %v1527
    %v1529 = vsel %vm1523, %v1526, %v1528
    %v1530 = vsel %vm1522, %v1509, %v1512
    %v1531 = vsel %vm1525, %v1518, 920167782
    %v1532 = vsel %vm1524, %v1515, %v1531
    %v1533 = vsel %vm1523, %v1530, %v1532
    %v1534 = vsel %vm1522, %v1512, %v1515
    %v1535 = vsel %vm1525, %v1521, 1326507024
    %v1536 = vsel %vm1524, %v1518, %v1535
    %v1537 = vsel %vm1523, %v1534, %v1536
    %v1538 = vshll.u32 %v1498, 8
    %v1539 = vmul.u32.u64.compose %v1538, %v1537
    %v1540 = vextract.low.u32 %v1539
    %v1541 = vextract.high.u32 %v1539
    %v1542 = vmul.u32.u64.compose %v1538, %v1533
    %v1543 = vextract.low.u32 %v1542
    %v1544 = vextract.high.u32 %v1542
    %v1545 = vmul.u32 %v1538, %v1529
    %v1546 = vadd.s32 %v1541, %v1543
    %vm1547 = vc.u32 %v1541, %v1543
    %v1548 = vadd.s32 %v1544, 1
    %v1549 = vsel %vm1547, %v1548, %v1544
    %v1550 = vadd.s32 %v1545, %v1549
    %v1551 = vadd.s32 %v1550, 536870912
    %v1552 = vshrl.u32 %v1551, 30
    %v1553 = vshll.u32 %v1552, 30
    %v1554 = vsub.s32 %v1550, %v1553
    %vm1555 = vcmp.lt.s32.totalorder %v1554, 0
    %v1556 = vsub.s32 0, %v1554
    %v1557 = vsel %vm1555, %v1556, %v1554
    %v1558 = vclz %v1557
    %v1559 = vsub.s32 %v1558, 2
    %vm1560 = vcmp.gt.s32.totalorder 0, %v1559
    %v1561 = vsel %vm1560, 0, %v1559
    %v1562 = vsub.s32 32, %v1561
    %v1563 = vshll.u32 %v1554, %v1561
    %v1564 = vshrl.u32 %v1546, %v1562
    %v1565 = vor.u32 %v1563, %v1564
    %v1566 = vsub.s32 4294967266, %v1561
    %v1567 = vadd.s32 %v1566, 127
    %v1568 = vshll.u32 %v1567, 23
    %v1569 = vor.u32 4788187, %v1568
    %v1570 = vand.u32 2147483647, %v1569
    %v1572 = vcvt.s32.f32 %v1565
    %v1573 = vmul.f32 %v1572, %v1570
    %v1574 = vxor.u32 %v1573, 2147483648
    %v1575 = vsel %vm1492, %v1574, %v1573
    %v1576 = vsub.s32 4, %v1552
    %v1577 = vsel %vm1492, %v1576, %v1552
    %v1578 = vsel %vm1491, %v1278, %v1575
    %v1579 = vsel %vm1491, 0, %v1577
    %v1580 = vcosq.f32.pop %v1578
    %v1581 = vsinq.f32.pop %v1578
    %vm1582 = vweird.f32 %v1278
    %v1583 = vand.u32 %v1579, 3
    %vm1584 = vcmp.lt.s32.totalorder %v1583, 2
    %vm1585 = vcmp.eq.s32.totalorder %v1583, 0
    %v1586 = vxor.u32 %v1581, 2147483648
    %v1587 = vsel %vm1585, %v1580, %v1586
    %vm1588 = vcmp.eq.s32.totalorder %v1583, 2
    %v1589 = vxor.u32 %v1580, 2147483648
    %v1590 = vsel %vm1588, %v1589, %v1581
    %v1591 = vsel %vm1584, %v1587, %v1590
    %v1592 = vsel %vm1582, nan, %v1591
    %v1593 = vand.u32 2147483647, %v1279
    %vm1594 = vcmp.le.f32.partialorder %v1593, 0.7853982
    %vm1595 = vcmp.lt.s32.totalorder %v1279, 0
    %v1596 = vand.u32 %v1279, 2139095040
    %v1597 = vshrl.u32 %v1596, 23
    %v1598 = vsub.s32 %v1597, 127
    %v1599 = vand.u32 2147483647, %v1279
    %v1600 = vand.u32 %v1599, 8388607
    %v1601 = vor.u32 %v1600, 8388608
    %v1602 = vsub.s32 0, %v1601
    %v1603 = vadd.s32 %v1598, 1
    %vm1604 = vcmp.gt.s32.totalorder %v1603, 0
    %v1605 = vsel %vm1604, %v1603, 0
    %v1606 = vshrl.u32 %v1605, 5
    %v1607 = vand.u32 %v1605, 31
    %v1608 = vsub.s32 32, %v1607
    %v1609 = vshrl.u32 683565275, %v1608
    %v1610 = vshll.u32 683565275, %v1607
    %v1611 = vshrl.u32 2475754826, %v1608
    %v1612 = vor.u32 %v1610, %v1611
    %v1613 = vshll.u32 2475754826, %v1607
    %v1614 = vshrl.u32 2131351028, %v1608
    %v1615 = vor.u32 %v1613, %v1614
    %v1616 = vshll.u32 2131351028, %v1607
    %v1617 = vshrl.u32 2102212464, %v1608
    %v1618 = vor.u32 %v1616, %v1617
    %v1619 = vshll.u32 2102212464, %v1607
    %v1620 = vshrl.u32 920167782, %v1608
    %v1621 = vor.u32 %v1619, %v1620
    %v1622 = vshll.u32 920167782, %v1607
    %v1623 = vshrl.u32 1326507024, %v1608
    %v1624 = vor.u32 %v1622, %v1623
    %vm1625 = vcmp.lt.s32.totalorder %v1606, 1
    %vm1626 = vcmp.lt.s32.totalorder %v1606, 2
    %vm1627 = vcmp.lt.s32.totalorder %v1606, 3
    %vm1628 = vcmp.lt.s32.totalorder %v1606, 4
    %v1629 = vsel %vm1625, %v1609, %v1612
    %v1630 = vsel %vm1628, %v1618, 2102212464
    %v1631 = vsel %vm1627, %v1615, %v1630
    %v1632 = vsel %vm1626, %v1629, %v1631
    %v1633 = vsel %vm1625, %v1612, %v1615
    %v1634 = vsel %vm1628, %v1621, 920167782
    %v1635 = vsel %vm1627, %v1618, %v1634
    %v1636 = vsel %vm1626, %v1633, %v1635
    %v1637 = vsel %vm1625, %v1615, %v1618
    %v1638 = vsel %vm1628, %v1624, 1326507024
    %v1639 = vsel %vm1627, %v1621, %v1638
    %v1640 = vsel %vm1626, %v1637, %v1639
    %v1641 = vshll.u32 %v1601, 8
    %v1642 = vmul.u32.u64.compose %v1641, %v1640
    %v1643 = vextract.low.u32 %v1642
    %v1644 = vextract.high.u32 %v1642
    %v1645 = vmul.u32.u64.compose %v1641, %v1636
    %v1646 = vextract.low.u32 %v1645
    %v1647 = vextract.high.u32 %v1645
    %v1648 = vmul.u32 %v1641, %v1632
    %v1649 = vadd.s32 %v1644, %v1646
    %vm1650 = vc.u32 %v1644, %v1646
    %v1651 = vadd.s32 %v1647, 1
    %v1652 = vsel %vm1650, %v1651, %v1647
    %v1653 = vadd.s32 %v1648, %v1652
    %v1654 = vadd.s32 %v1653, 536870912
    %v1655 = vshrl.u32 %v1654, 30
    %v1656 = vshll.u32 %v1655, 30
    %v1657 = vsub.s32 %v1653, %v1656
    %vm1658 = vcmp.lt.s32.totalorder %v1657, 0
    %v1659 = vsub.s32 0, %v1657
    %v1660 = vsel %vm1658, %v1659, %v1657
    %v1661 = vclz %v1660
    %v1662 = vsub.s32 %v1661, 2
    %vm1663 = vcmp.gt.s32.totalorder 0, %v1662
    %v1664 = vsel %vm1663, 0, %v1662
    %v1665 = vsub.s32 32, %v1664
    %v1666 = vshll.u32 %v1657, %v1664
    %v1667 = vshrl.u32 %v1649, %v1665
    %v1668 = vor.u32 %v1666, %v1667
    %v1669 = vsub.s32 4294967266, %v1664
    %v1670 = vadd.s32 %v1669, 127
    %v1671 = vshll.u32 %v1670, 23
    %v1672 = vor.u32 4788187, %v1671
    %v1673 = vand.u32 2147483647, %v1672
    %v1675 = vcvt.s32.f32 %v1668
    %v1676 = vmul.f32 %v1675, %v1673
    %v1677 = vxor.u32 %v1676, 2147483648
    %v1678 = vsel %vm1595, %v1677, %v1676
    %v1679 = vsub.s32 4, %v1655
    %v1680 = vsel %vm1595, %v1679, %v1655
    %v1681 = vsel %vm1594, %v1279, %v1678
    %v1682 = vsel %vm1594, 0, %v1680
    %v1683 = vcosq.f32.pop %v1681
    %v1684 = vsinq.f32.pop %v1681
    %vm1685 = vweird.f32 %v1279
    %v1686 = vand.u32 %v1682, 3
    %vm1687 = vcmp.lt.s32.totalorder %v1686, 2
    %vm1688 = vcmp.eq.s32.totalorder %v1686, 0
    %v1689 = vxor.u32 %v1684, 2147483648
    %v1690 = vsel %vm1688, %v1683, %v1689
    %vm1691 = vcmp.eq.s32.totalorder %v1686, 2
    %v1692 = vxor.u32 %v1683, 2147483648
    %v1693 = vsel %vm1691, %v1692, %v1684
    %v1694 = vsel %vm1687, %v1690, %v1693
    %v1695 = vsel %vm1685, nan, %v1694
    %v1696 = vmul.f32 %v1592, %v15
    %v1697 = vmul.f32 %v1695, %v15
    %1700 = vrot.lane.b32.xlu0 %v228, 6
    %v1701 = vpop.permute.xlu0 %1700
    %1702 = vrot.lane.b32.xlu0 %v229, 6
    %v1703 = vpop.permute.xlu0 %1702
    %1708 = vrot.lane.b32.xlu0 %v436, 12
    %v1709 = vpop.permute.xlu0 %1708
    %1710 = vrot.lane.b32.xlu0 %v437, 12
    %v1711 = vpop.permute.xlu0 %1710
    %1716 = vrot.lane.b32.xlu0 %v648, 18
    %v1717 = vpop.permute.xlu0 %1716
    %1718 = vrot.lane.b32.xlu0 %v649, 18
    %v1719 = vpop.permute.xlu0 %1718
    %1724 = vrot.lane.b32.xlu0 %v856, 24
    %v1725 = vpop.permute.xlu0 %1724
    %1726 = vrot.lane.b32.xlu0 %v857, 24
    %v1727 = vpop.permute.xlu0 %1726
    %1732 = vrot.lane.b32.xlu0 %v1068, 30
    %v1733 = vpop.permute.xlu0 %1732
    %1734 = vrot.lane.b32.xlu0 %v1069, 30
    %v1735 = vpop.permute.xlu0 %1734
    %1740 = vrot.lane.b32.xlu0 %v1276, 36
    %v1741 = vpop.permute.xlu0 %1740
    %1742 = vrot.lane.b32.xlu0 %v1277, 36
    %v1743 = vpop.permute.xlu0 %1742
    %1748 = vrot.lane.b32.xlu0 %v1488, 42
    %v1749 = vpop.permute.xlu0 %1748
    %1750 = vrot.lane.b32.xlu0 %v1489, 42
    %v1751 = vpop.permute.xlu0 %1750
    %1756 = vrot.lane.b32.xlu0 %v1696, 48
    %v1757 = vpop.permute.xlu0 %1756
    %1758 = vrot.lane.b32.xlu0 %v1697, 48
    %v1759 = vpop.permute.xlu0 %1758
    %vm1762 = vcmask 48128
    %v1763 = vsel %vm1762, %v9, %v1701
    %v1764 = vsel %vm1762, %v10, %v1703
    %vm1765 = vcmask 97280
    %v1766 = vsel %vm1765, %v1763, %v1709
    %v1767 = vsel %vm1765, %v1764, %v1711
    %vm1768 = vcmask 146432
    %v1769 = vsel %vm1768, %v1766, %v1717
    %v1770 = vsel %vm1768, %v1767, %v1719
    %vm1771 = vcmask 195584
    %v1772 = vsel %vm1771, %v1769, %v1725
    %v1773 = vsel %vm1771, %v1770, %v1727
    %vm1774 = vcmask 244736
    %v1775 = vsel %vm1774, %v1772, %v1733
    %v1776 = vsel %vm1774, %v1773, %v1735
    %vm1777 = vcmask 293888
    %v1778 = vsel %vm1777, %v1775, %v1741
    %v1779 = vsel %vm1777, %v1776, %v1743
    %vm1780 = vcmask 343040
    %v1781 = vsel %vm1780, %v1778, %v1749
    %v1782 = vsel %vm1780, %v1779, %v1751
    %vm1783 = vcmask 392192
    %v1784 = vsel %vm1783, %v1781, %v1757
    %v1785 = vsel %vm1783, %v1782, %v1759
    %vm1786 = vcmask 441344
    %1787 = vst.msk [vmem:[#allocation2] sm:$0xff] %vm1786, %v1784
    %1788 = vst.msk [vmem:[#allocation2 + $0x8] sm:$0xff] %vm1786, %v1785
    // Predicated region
    $region6: #{tpu_custom_call.1} parent=1 // pred_check
      _
    $region7: #{tpu_custom_call.1} parent=1 // pred_check_branch
      %1790 = sbr.rel (0) target = $region9
    $region8: #{tpu_custom_call.1} parent=1 // pred_region
      %s1792 = ssub.s32 256, 256
      %1793 = vsyncadd [#allocation3], %s1792
      %s1794 = sshll.u32 [#allocation2], 4
      %s1795 = int_to_ptr.vmem [resolvable:$true] %s1794
      %1800 = dma.vmem_to_hbm [thread:$0]  %s1795, 256, %s1, [#allocation3], 128, 128, 8
    $region9: #{tpu_custom_call.1} parent=1 // pred_fallthru
      _
    // Predicated region
    $region10: #{tpu_custom_call.1} parent=1 // pred_check
      _
    $region11: #{tpu_custom_call.1} parent=1 // pred_check_branch
      %1802 = sbr.rel (0) target = $region13
    $region12: #{tpu_custom_call.1} parent=1 // pred_region
      %1803 = dma.done [#allocation3], 256
    $region13: #{tpu_custom_call.1} parent=1 // pred_fallthru
      _
    %1804 = vsyncpa [#allocation3], 1

</llo_original>
